<compile_context>
chip_gen: v7x
topology: tpu7x:2x2x1
jax: 0.10.0
libtpu: 0.0.40
codegen_flags: <defaults>
</compile_context>

<pallas_src>
import jax
import jax.numpy as jnp
from jax.experimental import pallas as pl
from jax.experimental.pallas import tpu as pltpu


def memory_kernel(facts_ref, q_ref, m_ref, nf_ref,
                  w1t_ref, b1_ref, w2_ref,
                  wf_ref, wh_ref, bh_ref,
                  wtt_ref, bt_ref, o_ref):
    tb, L, D = facts_ref.shape
    H = wh_ref.shape[0]

    f = facts_ref[...].astype(jnp.float32)        # (TB, L, D)
    q = q_ref[...].astype(jnp.float32)            # (TB, D)
    m = m_ref[...].astype(jnp.float32)            # (TB, D)
    nf = nf_ref[...]                              # (TB, 1) int32

    qb = q[:, None, :]                            # (TB, 1, D)
    mb = m[:, None, :]

    # ---------------- attention scores ----------------
    w1t = w1t_ref[...].astype(jnp.float32)        # (4D, A), pre-transposed
    z1 = (f * qb).reshape(tb * L, D)
    z2 = (f * mb).reshape(tb * L, D)
    z3 = jnp.abs(f - qb).reshape(tb * L, D)
    z4 = jnp.abs(f - mb).reshape(tb * L, D)
    h1 = (jnp.dot(z1, w1t[:D], preferred_element_type=jnp.float32)
          + jnp.dot(z2, w1t[D:2 * D], preferred_element_type=jnp.float32)
          + jnp.dot(z3, w1t[2 * D:3 * D], preferred_element_type=jnp.float32)
          + jnp.dot(z4, w1t[3 * D:], preferred_element_type=jnp.float32)
          + b1_ref[...].astype(jnp.float32))
    h1 = jnp.tanh(h1)                             # (TB*L, A)
    A = h1.shape[-1]
    # W2 (A -> 1) as a single fused lane reduction (its bias is softmax-invariant).
    scores = jnp.sum(h1.reshape(tb, L, A) * w2_ref[...].astype(jnp.float32),
                     axis=-1)                     # (TB, L)

    # length mask + softmax over the facts axis
    pos = jax.lax.broadcasted_iota(jnp.int32, (tb, L), 1)
    masked = jnp.where(pos < nf, scores, -jnp.inf)
    mmax = jnp.max(masked, axis=-1, keepdims=True)
    e = jnp.exp(masked - mmax)
    g = e / jnp.sum(e, axis=-1, keepdims=True)    # (TB, L)

    # ---------------- attention GRU ----------------
    # Fact-side projections [Wr^T | W^T] hoisted out of the recurrence: one matmul.
    fp = jnp.dot(f.reshape(tb * L, D), wf_ref[...].astype(jnp.float32),
                 preferred_element_type=jnp.float32).reshape(tb, L, 2 * H)
    wh = wh_ref[...].astype(jnp.float32)          # (H, 2H) = [Ur^T | U^T]
    bh = bh_ref[...].astype(jnp.float32)          # (1, 2H) = [Ur_b | U_b]

    h = m                                         # h0 = m_old (requires agru_dim == rep_dim)
    c = jnp.zeros_like(h)
    for i in range(L):                            # static unroll over max_facts_len
        hp = jnp.dot(h, wh, preferred_element_type=jnp.float32) + bh   # (TB, 2H)
        pre_r = fp[:, i, :H] + hp[:, :H]
        r = 1.0 / (1.0 + jnp.exp(-pre_r))         # sigmoid
        h_t = jnp.tanh(fp[:, i, H:] + r * hp[:, H:])
        gi = g[:, i:i + 1]                        # (TB, 1)
        h = gi * h_t + (1.0 - gi) * h
        c = jnp.where(nf == i + 1, h, c)          # capture states[num_facts - 1]

    # ---------------- output projection ----------------
    wt = wtt_ref[...].astype(jnp.float32)         # (2D+H, D) = Wt^T
    out = (jnp.dot(m, wt[:D], preferred_element_type=jnp.float32)
           + jnp.dot(c, wt[D:D + H], preferred_element_type=jnp.float32)
           + jnp.dot(q, wt[D + H:], preferred_element_type=jnp.float32)
           + bt_ref[...].astype(jnp.float32))
    o_ref[...] = jnp.maximum(out, 0.0).astype(o_ref.dtype)


def memory_module(queries, facts, num_facts, m_old, params):
    """queries/m_old: (B,1,D); facts: (B,L,D); num_facts: list/array of ints (B,)."""
    B, L, D = facts.shape
    H = params["Ur"].shape[0]
    A = params["W1"].shape[0]
    assert H == D, "DMN memory module requires agru_dim == rep_dim (h0 = m_old)"

    q2 = queries.reshape(B, D)
    m2 = m_old.reshape(B, D)
    nf = jnp.asarray(num_facts, jnp.int32).reshape(B, 1)

    # Weight packing / pre-transposition (XLA side, outside the kernel).
    w1t = params["W1"].T                                              # (4D, A)
    b1 = params["b1"].reshape(1, A)
    w2 = params["W2"].reshape(1, A)                                   # W2 bias dropped (softmax-invariant)
    wf = jnp.concatenate([params["Wr"].T, params["W"].T], axis=1)     # (D, 2H)
    wh = jnp.concatenate([params["Ur"].T, params["U"].T], axis=1)     # (H, 2H)
    bh = jnp.concatenate([params["Ur_b"], params["U_b"]]).reshape(1, 2 * H)
    wtt = params["Wt"].T                                              # (2D+H, D)
    bt = params["Wt_b"].reshape(1, D)

    tb = B                       # one batch block here; grid axis is "parallel"-ready
    grid = (B // tb,)
    full2 = lambda i: (0, 0)

    out = pl.pallas_call(
        memory_kernel,
        out_shape=jax.ShapeDtypeStruct((B, D), queries.dtype),
        grid=grid,
        in_specs=[
            pl.BlockSpec((tb, L, D), lambda i: (i, 0, 0)),   # facts
            pl.BlockSpec((tb, D), lambda i: (i, 0)),         # queries
            pl.BlockSpec((tb, D), lambda i: (i, 0)),         # m_old
            pl.BlockSpec((tb, 1), lambda i: (i, 0)),         # num_facts
            pl.BlockSpec((4 * D, A), full2),                 # W1^T
            pl.BlockSpec((1, A), full2),                     # b1
            pl.BlockSpec((1, A), full2),                     # W2 row
            pl.BlockSpec((D, 2 * H), full2),                 # [Wr^T | W^T]
            pl.BlockSpec((H, 2 * H), full2),                 # [Ur^T | U^T]
            pl.BlockSpec((1, 2 * H), full2),                 # [Ur_b | U_b]
            pl.BlockSpec((2 * D + H, D), full2),             # Wt^T
            pl.BlockSpec((1, D), full2),                     # Wt bias
        ],
        out_specs=pl.BlockSpec((tb, D), lambda i: (i, 0)),
        compiler_params=pltpu.CompilerParams(
            dimension_semantics=("parallel",)),
    )(facts, q2, m2, nf, w1t, b1, w2, wf, wh, bh, wtt, bt)
    return out.reshape(B, 1, D)


# ---------------- pure-JAX reference (mirrors the PyTorch module) ----------------
def reference(queries, facts, num_facts, m_old, p):
    hi = jax.lax.Precision.HIGHEST
    B, L, D = facts.shape
    qe = jnp.broadcast_to(queries, facts.shape)
    me = jnp.broadcast_to(m_old, facts.shape)
    z = jnp.concatenate([facts * qe, facts * me,
                         jnp.abs(facts - qe), jnp.abs(facts - me)], axis=2)
    hp = jnp.tanh(jnp.dot(z, p["W1"].T, precision=hi) + p["b1"])
    Z = jnp.dot(hp, p["W2"].T, precision=hi) + p["b2"]                 # (B, L, 1)
    nf = jnp.asarray(num_facts, jnp.int32)
    mask = (jnp.arange(L)[None, :] < nf[:, None])[..., None]
    Z = jnp.where(mask, Z, -jnp.inf)
    g = jax.nn.softmax(Z, axis=1)

    h = m_old[:, 0, :]
    states = []
    for i in range(L):
        fact = facts[:, i]
        r = jax.nn.sigmoid(jnp.dot(fact, p["Wr"].T, precision=hi)
                           + jnp.dot(h, p["Ur"].T, precision=hi) + p["Ur_b"])
        h_t = jnp.tanh(jnp.dot(fact, p["W"].T, precision=hi)
                       + r * (jnp.dot(h, p["U"].T, precision=hi) + p["U_b"]))
        gi = g[:, i]
        h = gi * h_t + (1.0 - gi) * h
        states.append(h)
    states = jnp.stack(states, axis=1)                                  # (B, L, H)
    c = states[jnp.arange(B), nf - 1]
    cat = jnp.concatenate([m_old[:, 0, :], c, queries[:, 0, :]], axis=1)
    m = jax.nn.relu(jnp.dot(cat, p["Wt"].T, precision=hi) + p["Wt_b"])
    return m[:, None, :]


def _linear_init(key, out_dim, in_dim, bias=True):
    kw, kb = jax.random.split(key)
    bound = 1.0 / (in_dim ** 0.5)
    w = jax.random.uniform(kw, (out_dim, in_dim), jnp.float32, -bound, bound)
    if not bias:
        return w, None
    b = jax.random.uniform(kb, (out_dim,), jnp.float32, -bound, bound)
    return w, b


if __name__ == "__main__":
    B, L = 2, 8                # batch, max_facts_len
    D, A, H = 32, 64, 32       # rep_dim, attention_dim, agru_dim (H == D required)

    key = jax.random.PRNGKey(0)
    ks = jax.random.split(key, 12)

    W1, b1 = _linear_init(ks[0], A, 4 * D)
    W2, b2 = _linear_init(ks[1], 1, A)
    Wr, _ = _linear_init(ks[2], H, D, bias=False)
    Ur, Ur_b = _linear_init(ks[3], H, H)
    W, _ = _linear_init(ks[4], H, D, bias=False)
    U, U_b = _linear_init(ks[5], H, H)
    Wt, Wt_b = _linear_init(ks[6], D, 2 * D + H)
    params = dict(W1=W1, b1=b1, W2=W2, b2=b2, Wr=Wr, Ur=Ur, Ur_b=Ur_b,
                  W=W, U=U, U_b=U_b, Wt=Wt, Wt_b=Wt_b)

    queries = jax.random.normal(ks[7], (B, 1, D), dtype=jnp.float32)
    facts = jax.random.normal(ks[8], (B, L, D), dtype=jnp.float32)
    m_old = jax.random.normal(ks[9], (B, 1, D), dtype=jnp.float32)
    num_facts = [8, 5]          # ragged lengths, as in the PyTorch List[int]

    out = memory_module(queries, facts, num_facts, m_old, params)
    out = jax.block_until_ready(out)

    ref = reference(queries, facts, num_facts, m_old, params)
    assert out.shape == (B, 1, D)
    # Tolerance covers MXU f32 pass-count differences vs the XLA reference.
    assert jnp.allclose(out, ref, rtol=5e-3, atol=5e-3), (out, ref)

    print("KERNEL_OK")
</pallas_src>

<mosaic_0001>
module attributes {stable_mosaic.version = 11 : i64} {
  func.func @memory_kernel(%arg0: i32, %arg1: memref<2x8x32xf32, #tpu.memory_space<vmem>>, %arg2: memref<2x32xf32, #tpu.memory_space<vmem>>, %arg3: memref<2x32xf32, #tpu.memory_space<vmem>>, %arg4: memref<2x1xi32, #tpu.memory_space<vmem>>, %arg5: memref<128x64xf32, #tpu.memory_space<vmem>>, %arg6: memref<1x64xf32, #tpu.memory_space<vmem>>, %arg7: memref<1x64xf32, #tpu.memory_space<vmem>>, %arg8: memref<32x64xf32, #tpu.memory_space<vmem>>, %arg9: memref<32x64xf32, #tpu.memory_space<vmem>>, %arg10: memref<1x64xf32, #tpu.memory_space<vmem>>, %arg11: memref<96x32xf32, #tpu.memory_space<vmem>>, %arg12: memref<1x32xf32, #tpu.memory_space<vmem>>, %arg13: memref<2x32xf32, #tpu.memory_space<vmem>>) attributes {dimension_semantics = [#tpu.dimension_semantics<parallel>], iteration_bounds = array<i64: 1>, scalar_prefetch = 0 : i64, scratch_operands = 0 : i64, tpu.core_type = #tpu.core_type<tc>, window_params = [{transform_indices = @transform_0, window_bounds = array<i64: 2, 8, 32>}, {transform_indices = @transform_1, window_bounds = array<i64: 2, 32>}, {transform_indices = @transform_2, window_bounds = array<i64: 2, 32>}, {transform_indices = @transform_3, window_bounds = array<i64: 2, 1>}, {pipeline_mode = #tpu.pipeline_mode<synchronous>, transform_indices = @transform_4, window_bounds = array<i64: 128, 64>}, {pipeline_mode = #tpu.pipeline_mode<synchronous>, transform_indices = @transform_5, window_bounds = array<i64: 1, 64>}, {pipeline_mode = #tpu.pipeline_mode<synchronous>, transform_indices = @transform_6, window_bounds = array<i64: 1, 64>}, {pipeline_mode = #tpu.pipeline_mode<synchronous>, transform_indices = @transform_7, window_bounds = array<i64: 32, 64>}, {pipeline_mode = #tpu.pipeline_mode<synchronous>, transform_indices = @transform_8, window_bounds = array<i64: 32, 64>}, {pipeline_mode = #tpu.pipeline_mode<synchronous>, transform_indices = @transform_9, window_bounds = array<i64: 1, 64>}, {pipeline_mode = #tpu.pipeline_mode<synchronous>, transform_indices = @transform_10, window_bounds = array<i64: 96, 32>}, {pipeline_mode = #tpu.pipeline_mode<synchronous>, transform_indices = @transform_11, window_bounds = array<i64: 1, 32>}, {transform_indices = @transform_12, window_bounds = array<i64: 2, 32>}]} {
    %c0 = arith.constant 0 : index
    %c0_0 = arith.constant 0 : index
    %c0_1 = arith.constant 0 : index
    %0 = vector.load %arg1[%c0, %c0_0, %c0_1] : memref<2x8x32xf32, #tpu.memory_space<vmem>>, vector<2x8x32xf32>
    %c0_2 = arith.constant 0 : index
    %c0_3 = arith.constant 0 : index
    %1 = vector.load %arg2[%c0_2, %c0_3] : memref<2x32xf32, #tpu.memory_space<vmem>>, vector<2x32xf32>
    %c0_4 = arith.constant 0 : index
    %c0_5 = arith.constant 0 : index
    %2 = vector.load %arg3[%c0_4, %c0_5] : memref<2x32xf32, #tpu.memory_space<vmem>>, vector<2x32xf32>
    %c0_6 = arith.constant 0 : index
    %c0_7 = arith.constant 0 : index
    %3 = vector.load %arg4[%c0_6, %c0_7] : memref<2x1xi32, #tpu.memory_space<vmem>>, vector<2x1xi32>
    %4 = vector.shape_cast %1 : vector<2x32xf32> to vector<2x1x32xf32>
    %5 = vector.shape_cast %2 : vector<2x32xf32> to vector<2x1x32xf32>
    %c0_8 = arith.constant 0 : index
    %c0_9 = arith.constant 0 : index
    %6 = vector.load %arg5[%c0_8, %c0_9] : memref<128x64xf32, #tpu.memory_space<vmem>>, vector<128x64xf32>
    %7 = vector.broadcast %4 : vector<2x1x32xf32> to vector<2x8x32xf32>
    %8 = arith.mulf %0, %7 : vector<2x8x32xf32>
    %9 = vector.shape_cast %8 : vector<2x8x32xf32> to vector<16x32xf32>
    %10 = vector.broadcast %5 : vector<2x1x32xf32> to vector<2x8x32xf32>
    %11 = arith.mulf %0, %10 : vector<2x8x32xf32>
    %12 = vector.shape_cast %11 : vector<2x8x32xf32> to vector<16x32xf32>
    %13 = vector.broadcast %4 : vector<2x1x32xf32> to vector<2x8x32xf32>
    %14 = arith.subf %0, %13 : vector<2x8x32xf32>
    %15 = math.absf %14 : vector<2x8x32xf32>
    %16 = vector.shape_cast %15 : vector<2x8x32xf32> to vector<16x32xf32>
    %17 = vector.broadcast %5 : vector<2x1x32xf32> to vector<2x8x32xf32>
    %18 = arith.subf %0, %17 : vector<2x8x32xf32>
    %19 = math.absf %18 : vector<2x8x32xf32>
    %20 = vector.shape_cast %19 : vector<2x8x32xf32> to vector<16x32xf32>
    %21 = vector.extract_strided_slice %6 {offsets = [0, 0], sizes = [32, 64], strides = [1, 1]} : vector<128x64xf32> to vector<32x64xf32>
    %cst = arith.constant dense<0.000000e+00> : vector<16x64xf32>
    %22 = tpu.matmul %9, %21, %cst {dimension_numbers = #tpu.dot_dimension_numbers<[1], [0], [0], [1], [0, 0, 1, 1], [], []>} : vector<16x32xf32>, vector<32x64xf32>, vector<16x64xf32> -> vector<16x64xf32>
    %23 = vector.extract_strided_slice %6 {offsets = [32, 0], sizes = [32, 64], strides = [1, 1]} : vector<128x64xf32> to vector<32x64xf32>
    %cst_10 = arith.constant dense<0.000000e+00> : vector<16x64xf32>
    %24 = tpu.matmul %12, %23, %cst_10 {dimension_numbers = #tpu.dot_dimension_numbers<[1], [0], [0], [1], [0, 0, 1, 1], [], []>} : vector<16x32xf32>, vector<32x64xf32>, vector<16x64xf32> -> vector<16x64xf32>
    %25 = arith.addf %22, %24 : vector<16x64xf32>
    %26 = vector.extract_strided_slice %6 {offsets = [64, 0], sizes = [32, 64], strides = [1, 1]} : vector<128x64xf32> to vector<32x64xf32>
    %cst_11 = arith.constant dense<0.000000e+00> : vector<16x64xf32>
    %27 = tpu.matmul %16, %26, %cst_11 {dimension_numbers = #tpu.dot_dimension_numbers<[1], [0], [0], [1], [0, 0, 1, 1], [], []>} : vector<16x32xf32>, vector<32x64xf32>, vector<16x64xf32> -> vector<16x64xf32>
    %28 = arith.addf %25, %27 : vector<16x64xf32>
    %29 = vector.extract_strided_slice %6 {offsets = [96, 0], sizes = [32, 64], strides = [1, 1]} : vector<128x64xf32> to vector<32x64xf32>
    %cst_12 = arith.constant dense<0.000000e+00> : vector<16x64xf32>
    %30 = tpu.matmul %20, %29, %cst_12 {dimension_numbers = #tpu.dot_dimension_numbers<[1], [0], [0], [1], [0, 0, 1, 1], [], []>} : vector<16x32xf32>, vector<32x64xf32>, vector<16x64xf32> -> vector<16x64xf32>
    %31 = arith.addf %28, %30 : vector<16x64xf32>
    %c0_13 = arith.constant 0 : index
    %c0_14 = arith.constant 0 : index
    %32 = vector.load %arg6[%c0_13, %c0_14] : memref<1x64xf32, #tpu.memory_space<vmem>>, vector<1x64xf32>
    %33 = vector.broadcast %32 : vector<1x64xf32> to vector<16x64xf32>
    %34 = arith.addf %31, %33 : vector<16x64xf32>
    %35 = math.tanh %34 : vector<16x64xf32>
    %36 = vector.shape_cast %35 : vector<16x64xf32> to vector<2x8x64xf32>
    %c0_15 = arith.constant 0 : index
    %c0_16 = arith.constant 0 : index
    %37 = vector.load %arg7[%c0_15, %c0_16] : memref<1x64xf32, #tpu.memory_space<vmem>>, vector<1x64xf32>
    %38 = vector.shape_cast %37 : vector<1x64xf32> to vector<1x1x64xf32>
    %39 = vector.broadcast %38 : vector<1x1x64xf32> to vector<2x8x64xf32>
    %40 = arith.mulf %36, %39 : vector<2x8x64xf32>
    %cst_17 = arith.constant dense<0.000000e+00> : vector<2x8xf32>
    %41 = vector.multi_reduction <add>, %40, %cst_17 [2] : vector<2x8x64xf32> to vector<2x8xf32>
    %42 = tpu.iota {dimensions = array<i32: 1>} : vector<2x8xi32>
    %43 = vector.broadcast %3 : vector<2x1xi32> to vector<2x8xi32>
    %44 = arith.cmpi slt, %42, %43 : vector<2x8xi32>
    %cst_18 = arith.constant 0xFF800000 : f32
    %45 = vector.broadcast %cst_18 : f32 to vector<2x8xf32>
    %46 = arith.select %44, %41, %45 : vector<2x8xi1>, vector<2x8xf32>
    %cst_19 = arith.constant dense<0xFF800000> : vector<2xf32>
    %47 = vector.multi_reduction <maximumf>, %46, %cst_19 [1] : vector<2x8xf32> to vector<2xf32>
    %48 = vector.shape_cast %47 : vector<2xf32> to vector<2x1xf32>
    %49 = vector.broadcast %48 : vector<2x1xf32> to vector<2x8xf32>
    %50 = arith.subf %46, %49 : vector<2x8xf32>
    %51 = math.exp %50 : vector<2x8xf32>
    %cst_20 = arith.constant dense<0.000000e+00> : vector<2xf32>
    %52 = vector.multi_reduction <add>, %51, %cst_20 [1] : vector<2x8xf32> to vector<2xf32>
    %53 = vector.shape_cast %52 : vector<2xf32> to vector<2x1xf32>
    %54 = vector.broadcast %53 : vector<2x1xf32> to vector<2x8xf32>
    %55 = arith.divf %51, %54 : vector<2x8xf32>
    %56 = vector.shape_cast %0 : vector<2x8x32xf32> to vector<16x32xf32>
    %c0_21 = arith.constant 0 : index
    %c0_22 = arith.constant 0 : index
    %57 = vector.load %arg8[%c0_21, %c0_22] : memref<32x64xf32, #tpu.memory_space<vmem>>, vector<32x64xf32>
    %cst_23 = arith.constant dense<0.000000e+00> : vector<16x64xf32>
    %58 = tpu.matmul %56, %57, %cst_23 {dimension_numbers = #tpu.dot_dimension_numbers<[1], [0], [0], [1], [0, 0, 1, 1], [], []>} : vector<16x32xf32>, vector<32x64xf32>, vector<16x64xf32> -> vector<16x64xf32>
    %59 = vector.shape_cast %58 : vector<16x64xf32> to vector<2x8x64xf32>
    %c0_24 = arith.constant 0 : index
    %c0_25 = arith.constant 0 : index
    %60 = vector.load %arg9[%c0_24, %c0_25] : memref<32x64xf32, #tpu.memory_space<vmem>>, vector<32x64xf32>
    %c0_26 = arith.constant 0 : index
    %c0_27 = arith.constant 0 : index
    %61 = vector.load %arg10[%c0_26, %c0_27] : memref<1x64xf32, #tpu.memory_space<vmem>>, vector<1x64xf32>
    %cst_28 = arith.constant 0.000000e+00 : f32
    %62 = vector.broadcast %cst_28 : f32 to vector<2x32xf32>
    %cst_29 = arith.constant dense<0.000000e+00> : vector<2x64xf32>
    %63 = tpu.matmul %2, %60, %cst_29 {dimension_numbers = #tpu.dot_dimension_numbers<[1], [0], [0], [1], [0, 0, 1, 1], [], []>} : vector<2x32xf32>, vector<32x64xf32>, vector<2x64xf32> -> vector<2x64xf32>
    %64 = vector.broadcast %61 : vector<1x64xf32> to vector<2x64xf32>
    %65 = arith.addf %63, %64 : vector<2x64xf32>
    %66 = vector.extract_strided_slice %59 {offsets = [0, 0, 0], sizes = [2, 1, 32], strides = [1, 1, 1]} : vector<2x8x64xf32> to vector<2x1x32xf32>
    %67 = vector.shape_cast %66 : vector<2x1x32xf32> to vector<2x32xf32>
    %68 = vector.extract_strided_slice %65 {offsets = [0, 0], sizes = [2, 32], strides = [1, 1]} : vector<2x64xf32> to vector<2x32xf32>
    %69 = arith.addf %67, %68 : vector<2x32xf32>
    %cst_30 = arith.constant 0.000000e+00 : f32
    %70 = vector.broadcast %cst_30 : f32 to vector<2x32xf32>
    %71 = arith.subf %70, %69 : vector<2x32xf32>
    %72 = math.exp %71 : vector<2x32xf32>
    %cst_31 = arith.constant 1.000000e+00 : f32
    %73 = vector.broadcast %cst_31 : f32 to vector<2x32xf32>
    %74 = arith.addf %73, %72 : vector<2x32xf32>
    %cst_32 = arith.constant 1.000000e+00 : f32
    %75 = vector.broadcast %cst_32 : f32 to vector<2x32xf32>
    %76 = arith.divf %75, %74 : vector<2x32xf32>
    %77 = vector.extract_strided_slice %59 {offsets = [0, 0, 32], sizes = [2, 1, 32], strides = [1, 1, 1]} : vector<2x8x64xf32> to vector<2x1x32xf32>
    %78 = vector.shape_cast %77 : vector<2x1x32xf32> to vector<2x32xf32>
    %79 = vector.extract_strided_slice %65 {offsets = [0, 32], sizes = [2, 32], strides = [1, 1]} : vector<2x64xf32> to vector<2x32xf32>
    %80 = arith.mulf %76, %79 : vector<2x32xf32>
    %81 = arith.addf %78, %80 : vector<2x32xf32>
    %82 = math.tanh %81 : vector<2x32xf32>
    %83 = vector.extract_strided_slice %55 {offsets = [0, 0], sizes = [2, 1], strides = [1, 1]} : vector<2x8xf32> to vector<2x1xf32>
    %84 = vector.broadcast %83 : vector<2x1xf32> to vector<2x32xf32>
    %85 = arith.mulf %84, %82 : vector<2x32xf32>
    %cst_33 = arith.constant 1.000000e+00 : f32
    %86 = vector.broadcast %cst_33 : f32 to vector<2x1xf32>
    %87 = arith.subf %86, %83 : vector<2x1xf32>
    %88 = vector.broadcast %87 : vector<2x1xf32> to vector<2x32xf32>
    %89 = arith.mulf %88, %2 : vector<2x32xf32>
    %90 = arith.addf %85, %89 : vector<2x32xf32>
    %c1_i32 = arith.constant 1 : i32
    %91 = vector.broadcast %c1_i32 : i32 to vector<2x1xi32>
    %92 = arith.cmpi eq, %3, %91 : vector<2x1xi32>
    %93 = vector.shape_cast %92 : vector<2x1xi1> to vector<2x1xi1>
    %94 = vector.broadcast %93 : vector<2x1xi1> to vector<2x32xi1>
    %95 = arith.select %94, %90, %62 : vector<2x32xi1>, vector<2x32xf32>
    %cst_34 = arith.constant dense<0.000000e+00> : vector<2x64xf32>
    %96 = tpu.matmul %90, %60, %cst_34 {dimension_numbers = #tpu.dot_dimension_numbers<[1], [0], [0], [1], [0, 0, 1, 1], [], []>} : vector<2x32xf32>, vector<32x64xf32>, vector<2x64xf32> -> vector<2x64xf32>
    %97 = vector.broadcast %61 : vector<1x64xf32> to vector<2x64xf32>
    %98 = arith.addf %96, %97 : vector<2x64xf32>
    %99 = vector.extract_strided_slice %59 {offsets = [0, 1, 0], sizes = [2, 1, 32], strides = [1, 1, 1]} : vector<2x8x64xf32> to vector<2x1x32xf32>
    %100 = vector.shape_cast %99 : vector<2x1x32xf32> to vector<2x32xf32>
    %101 = vector.extract_strided_slice %98 {offsets = [0, 0], sizes = [2, 32], strides = [1, 1]} : vector<2x64xf32> to vector<2x32xf32>
    %102 = arith.addf %100, %101 : vector<2x32xf32>
    %cst_35 = arith.constant 0.000000e+00 : f32
    %103 = vector.broadcast %cst_35 : f32 to vector<2x32xf32>
    %104 = arith.subf %103, %102 : vector<2x32xf32>
    %105 = math.exp %104 : vector<2x32xf32>
    %cst_36 = arith.constant 1.000000e+00 : f32
    %106 = vector.broadcast %cst_36 : f32 to vector<2x32xf32>
    %107 = arith.addf %106, %105 : vector<2x32xf32>
    %cst_37 = arith.constant 1.000000e+00 : f32
    %108 = vector.broadcast %cst_37 : f32 to vector<2x32xf32>
    %109 = arith.divf %108, %107 : vector<2x32xf32>
    %110 = vector.extract_strided_slice %59 {offsets = [0, 1, 32], sizes = [2, 1, 32], strides = [1, 1, 1]} : vector<2x8x64xf32> to vector<2x1x32xf32>
    %111 = vector.shape_cast %110 : vector<2x1x32xf32> to vector<2x32xf32>
    %112 = vector.extract_strided_slice %98 {offsets = [0, 32], sizes = [2, 32], strides = [1, 1]} : vector<2x64xf32> to vector<2x32xf32>
    %113 = arith.mulf %109, %112 : vector<2x32xf32>
    %114 = arith.addf %111, %113 : vector<2x32xf32>
    %115 = math.tanh %114 : vector<2x32xf32>
    %116 = vector.extract_strided_slice %55 {offsets = [0, 1], sizes = [2, 1], strides = [1, 1]} : vector<2x8xf32> to vector<2x1xf32>
    %117 = vector.broadcast %116 : vector<2x1xf32> to vector<2x32xf32>
    %118 = arith.mulf %117, %115 : vector<2x32xf32>
    %cst_38 = arith.constant 1.000000e+00 : f32
    %119 = vector.broadcast %cst_38 : f32 to vector<2x1xf32>
    %120 = arith.subf %119, %116 : vector<2x1xf32>
    %121 = vector.broadcast %120 : vector<2x1xf32> to vector<2x32xf32>
    %122 = arith.mulf %121, %90 : vector<2x32xf32>
    %123 = arith.addf %118, %122 : vector<2x32xf32>
    %c2_i32 = arith.constant 2 : i32
    %124 = vector.broadcast %c2_i32 : i32 to vector<2x1xi32>
    %125 = arith.cmpi eq, %3, %124 : vector<2x1xi32>
    %126 = vector.shape_cast %125 : vector<2x1xi1> to vector<2x1xi1>
    %127 = vector.broadcast %126 : vector<2x1xi1> to vector<2x32xi1>
    %128 = arith.select %127, %123, %95 : vector<2x32xi1>, vector<2x32xf32>
    %cst_39 = arith.constant dense<0.000000e+00> : vector<2x64xf32>
    %129 = tpu.matmul %123, %60, %cst_39 {dimension_numbers = #tpu.dot_dimension_numbers<[1], [0], [0], [1], [0, 0, 1, 1], [], []>} : vector<2x32xf32>, vector<32x64xf32>, vector<2x64xf32> -> vector<2x64xf32>
    %130 = vector.broadcast %61 : vector<1x64xf32> to vector<2x64xf32>
    %131 = arith.addf %129, %130 : vector<2x64xf32>
    %132 = vector.extract_strided_slice %59 {offsets = [0, 2, 0], sizes = [2, 1, 32], strides = [1, 1, 1]} : vector<2x8x64xf32> to vector<2x1x32xf32>
    %133 = vector.shape_cast %132 : vector<2x1x32xf32> to vector<2x32xf32>
    %134 = vector.extract_strided_slice %131 {offsets = [0, 0], sizes = [2, 32], strides = [1, 1]} : vector<2x64xf32> to vector<2x32xf32>
    %135 = arith.addf %133, %134 : vector<2x32xf32>
    %cst_40 = arith.constant 0.000000e+00 : f32
    %136 = vector.broadcast %cst_40 : f32 to vector<2x32xf32>
    %137 = arith.subf %136, %135 : vector<2x32xf32>
    %138 = math.exp %137 : vector<2x32xf32>
    %cst_41 = arith.constant 1.000000e+00 : f32
    %139 = vector.broadcast %cst_41 : f32 to vector<2x32xf32>
    %140 = arith.addf %139, %138 : vector<2x32xf32>
    %cst_42 = arith.constant 1.000000e+00 : f32
    %141 = vector.broadcast %cst_42 : f32 to vector<2x32xf32>
    %142 = arith.divf %141, %140 : vector<2x32xf32>
    %143 = vector.extract_strided_slice %59 {offsets = [0, 2, 32], sizes = [2, 1, 32], strides = [1, 1, 1]} : vector<2x8x64xf32> to vector<2x1x32xf32>
    %144 = vector.shape_cast %143 : vector<2x1x32xf32> to vector<2x32xf32>
    %145 = vector.extract_strided_slice %131 {offsets = [0, 32], sizes = [2, 32], strides = [1, 1]} : vector<2x64xf32> to vector<2x32xf32>
    %146 = arith.mulf %142, %145 : vector<2x32xf32>
    %147 = arith.addf %144, %146 : vector<2x32xf32>
    %148 = math.tanh %147 : vector<2x32xf32>
    %149 = vector.extract_strided_slice %55 {offsets = [0, 2], sizes = [2, 1], strides = [1, 1]} : vector<2x8xf32> to vector<2x1xf32>
    %150 = vector.broadcast %149 : vector<2x1xf32> to vector<2x32xf32>
    %151 = arith.mulf %150, %148 : vector<2x32xf32>
    %cst_43 = arith.constant 1.000000e+00 : f32
    %152 = vector.broadcast %cst_43 : f32 to vector<2x1xf32>
    %153 = arith.subf %152, %149 : vector<2x1xf32>
    %154 = vector.broadcast %153 : vector<2x1xf32> to vector<2x32xf32>
    %155 = arith.mulf %154, %123 : vector<2x32xf32>
    %156 = arith.addf %151, %155 : vector<2x32xf32>
    %c3_i32 = arith.constant 3 : i32
    %157 = vector.broadcast %c3_i32 : i32 to vector<2x1xi32>
    %158 = arith.cmpi eq, %3, %157 : vector<2x1xi32>
    %159 = vector.shape_cast %158 : vector<2x1xi1> to vector<2x1xi1>
    %160 = vector.broadcast %159 : vector<2x1xi1> to vector<2x32xi1>
    %161 = arith.select %160, %156, %128 : vector<2x32xi1>, vector<2x32xf32>
    %cst_44 = arith.constant dense<0.000000e+00> : vector<2x64xf32>
    %162 = tpu.matmul %156, %60, %cst_44 {dimension_numbers = #tpu.dot_dimension_numbers<[1], [0], [0], [1], [0, 0, 1, 1], [], []>} : vector<2x32xf32>, vector<32x64xf32>, vector<2x64xf32> -> vector<2x64xf32>
    %163 = vector.broadcast %61 : vector<1x64xf32> to vector<2x64xf32>
    %164 = arith.addf %162, %163 : vector<2x64xf32>
    %165 = vector.extract_strided_slice %59 {offsets = [0, 3, 0], sizes = [2, 1, 32], strides = [1, 1, 1]} : vector<2x8x64xf32> to vector<2x1x32xf32>
    %166 = vector.shape_cast %165 : vector<2x1x32xf32> to vector<2x32xf32>
    %167 = vector.extract_strided_slice %164 {offsets = [0, 0], sizes = [2, 32], strides = [1, 1]} : vector<2x64xf32> to vector<2x32xf32>
    %168 = arith.addf %166, %167 : vector<2x32xf32>
    %cst_45 = arith.constant 0.000000e+00 : f32
    %169 = vector.broadcast %cst_45 : f32 to vector<2x32xf32>
    %170 = arith.subf %169, %168 : vector<2x32xf32>
    %171 = math.exp %170 : vector<2x32xf32>
    %cst_46 = arith.constant 1.000000e+00 : f32
    %172 = vector.broadcast %cst_46 : f32 to vector<2x32xf32>
    %173 = arith.addf %172, %171 : vector<2x32xf32>
    %cst_47 = arith.constant 1.000000e+00 : f32
    %174 = vector.broadcast %cst_47 : f32 to vector<2x32xf32>
    %175 = arith.divf %174, %173 : vector<2x32xf32>
    %176 = vector.extract_strided_slice %59 {offsets = [0, 3, 32], sizes = [2, 1, 32], strides = [1, 1, 1]} : vector<2x8x64xf32> to vector<2x1x32xf32>
    %177 = vector.shape_cast %176 : vector<2x1x32xf32> to vector<2x32xf32>
    %178 = vector.extract_strided_slice %164 {offsets = [0, 32], sizes = [2, 32], strides = [1, 1]} : vector<2x64xf32> to vector<2x32xf32>
    %179 = arith.mulf %175, %178 : vector<2x32xf32>
    %180 = arith.addf %177, %179 : vector<2x32xf32>
    %181 = math.tanh %180 : vector<2x32xf32>
    %182 = vector.extract_strided_slice %55 {offsets = [0, 3], sizes = [2, 1], strides = [1, 1]} : vector<2x8xf32> to vector<2x1xf32>
    %183 = vector.broadcast %182 : vector<2x1xf32> to vector<2x32xf32>
    %184 = arith.mulf %183, %181 : vector<2x32xf32>
    %cst_48 = arith.constant 1.000000e+00 : f32
    %185 = vector.broadcast %cst_48 : f32 to vector<2x1xf32>
    %186 = arith.subf %185, %182 : vector<2x1xf32>
    %187 = vector.broadcast %186 : vector<2x1xf32> to vector<2x32xf32>
    %188 = arith.mulf %187, %156 : vector<2x32xf32>
    %189 = arith.addf %184, %188 : vector<2x32xf32>
    %c4_i32 = arith.constant 4 : i32
    %190 = vector.broadcast %c4_i32 : i32 to vector<2x1xi32>
    %191 = arith.cmpi eq, %3, %190 : vector<2x1xi32>
    %192 = vector.shape_cast %191 : vector<2x1xi1> to vector<2x1xi1>
    %193 = vector.broadcast %192 : vector<2x1xi1> to vector<2x32xi1>
    %194 = arith.select %193, %189, %161 : vector<2x32xi1>, vector<2x32xf32>
    %cst_49 = arith.constant dense<0.000000e+00> : vector<2x64xf32>
    %195 = tpu.matmul %189, %60, %cst_49 {dimension_numbers = #tpu.dot_dimension_numbers<[1], [0], [0], [1], [0, 0, 1, 1], [], []>} : vector<2x32xf32>, vector<32x64xf32>, vector<2x64xf32> -> vector<2x64xf32>
    %196 = vector.broadcast %61 : vector<1x64xf32> to vector<2x64xf32>
    %197 = arith.addf %195, %196 : vector<2x64xf32>
    %198 = vector.extract_strided_slice %59 {offsets = [0, 4, 0], sizes = [2, 1, 32], strides = [1, 1, 1]} : vector<2x8x64xf32> to vector<2x1x32xf32>
    %199 = vector.shape_cast %198 : vector<2x1x32xf32> to vector<2x32xf32>
    %200 = vector.extract_strided_slice %197 {offsets = [0, 0], sizes = [2, 32], strides = [1, 1]} : vector<2x64xf32> to vector<2x32xf32>
    %201 = arith.addf %199, %200 : vector<2x32xf32>
    %cst_50 = arith.constant 0.000000e+00 : f32
    %202 = vector.broadcast %cst_50 : f32 to vector<2x32xf32>
    %203 = arith.subf %202, %201 : vector<2x32xf32>
    %204 = math.exp %203 : vector<2x32xf32>
    %cst_51 = arith.constant 1.000000e+00 : f32
    %205 = vector.broadcast %cst_51 : f32 to vector<2x32xf32>
    %206 = arith.addf %205, %204 : vector<2x32xf32>
    %cst_52 = arith.constant 1.000000e+00 : f32
    %207 = vector.broadcast %cst_52 : f32 to vector<2x32xf32>
    %208 = arith.divf %207, %206 : vector<2x32xf32>
    %209 = vector.extract_strided_slice %59 {offsets = [0, 4, 32], sizes = [2, 1, 32], strides = [1, 1, 1]} : vector<2x8x64xf32> to vector<2x1x32xf32>
    %210 = vector.shape_cast %209 : vector<2x1x32xf32> to vector<2x32xf32>
    %211 = vector.extract_strided_slice %197 {offsets = [0, 32], sizes = [2, 32], strides = [1, 1]} : vector<2x64xf32> to vector<2x32xf32>
    %212 = arith.mulf %208, %211 : vector<2x32xf32>
    %213 = arith.addf %210, %212 : vector<2x32xf32>
    %214 = math.tanh %213 : vector<2x32xf32>
    %215 = vector.extract_strided_slice %55 {offsets = [0, 4], sizes = [2, 1], strides = [1, 1]} : vector<2x8xf32> to vector<2x1xf32>
    %216 = vector.broadcast %215 : vector<2x1xf32> to vector<2x32xf32>
    %217 = arith.mulf %216, %214 : vector<2x32xf32>
    %cst_53 = arith.constant 1.000000e+00 : f32
    %218 = vector.broadcast %cst_53 : f32 to vector<2x1xf32>
    %219 = arith.subf %218, %215 : vector<2x1xf32>
    %220 = vector.broadcast %219 : vector<2x1xf32> to vector<2x32xf32>
    %221 = arith.mulf %220, %189 : vector<2x32xf32>
    %222 = arith.addf %217, %221 : vector<2x32xf32>
    %c5_i32 = arith.constant 5 : i32
    %223 = vector.broadcast %c5_i32 : i32 to vector<2x1xi32>
    %224 = arith.cmpi eq, %3, %223 : vector<2x1xi32>
    %225 = vector.shape_cast %224 : vector<2x1xi1> to vector<2x1xi1>
    %226 = vector.broadcast %225 : vector<2x1xi1> to vector<2x32xi1>
    %227 = arith.select %226, %222, %194 : vector<2x32xi1>, vector<2x32xf32>
    %cst_54 = arith.constant dense<0.000000e+00> : vector<2x64xf32>
    %228 = tpu.matmul %222, %60, %cst_54 {dimension_numbers = #tpu.dot_dimension_numbers<[1], [0], [0], [1], [0, 0, 1, 1], [], []>} : vector<2x32xf32>, vector<32x64xf32>, vector<2x64xf32> -> vector<2x64xf32>
    %229 = vector.broadcast %61 : vector<1x64xf32> to vector<2x64xf32>
    %230 = arith.addf %228, %229 : vector<2x64xf32>
    %231 = vector.extract_strided_slice %59 {offsets = [0, 5, 0], sizes = [2, 1, 32], strides = [1, 1, 1]} : vector<2x8x64xf32> to vector<2x1x32xf32>
    %232 = vector.shape_cast %231 : vector<2x1x32xf32> to vector<2x32xf32>
    %233 = vector.extract_strided_slice %230 {offsets = [0, 0], sizes = [2, 32], strides = [1, 1]} : vector<2x64xf32> to vector<2x32xf32>
    %234 = arith.addf %232, %233 : vector<2x32xf32>
    %cst_55 = arith.constant 0.000000e+00 : f32
    %235 = vector.broadcast %cst_55 : f32 to vector<2x32xf32>
    %236 = arith.subf %235, %234 : vector<2x32xf32>
    %237 = math.exp %236 : vector<2x32xf32>
    %cst_56 = arith.constant 1.000000e+00 : f32
    %238 = vector.broadcast %cst_56 : f32 to vector<2x32xf32>
    %239 = arith.addf %238, %237 : vector<2x32xf32>
    %cst_57 = arith.constant 1.000000e+00 : f32
    %240 = vector.broadcast %cst_57 : f32 to vector<2x32xf32>
    %241 = arith.divf %240, %239 : vector<2x32xf32>
    %242 = vector.extract_strided_slice %59 {offsets = [0, 5, 32], sizes = [2, 1, 32], strides = [1, 1, 1]} : vector<2x8x64xf32> to vector<2x1x32xf32>
    %243 = vector.shape_cast %242 : vector<2x1x32xf32> to vector<2x32xf32>
    %244 = vector.extract_strided_slice %230 {offsets = [0, 32], sizes = [2, 32], strides = [1, 1]} : vector<2x64xf32> to vector<2x32xf32>
    %245 = arith.mulf %241, %244 : vector<2x32xf32>
    %246 = arith.addf %243, %245 : vector<2x32xf32>
    %247 = math.tanh %246 : vector<2x32xf32>
    %248 = vector.extract_strided_slice %55 {offsets = [0, 5], sizes = [2, 1], strides = [1, 1]} : vector<2x8xf32> to vector<2x1xf32>
    %249 = vector.broadcast %248 : vector<2x1xf32> to vector<2x32xf32>
    %250 = arith.mulf %249, %247 : vector<2x32xf32>
    %cst_58 = arith.constant 1.000000e+00 : f32
    %251 = vector.broadcast %cst_58 : f32 to vector<2x1xf32>
    %252 = arith.subf %251, %248 : vector<2x1xf32>
    %253 = vector.broadcast %252 : vector<2x1xf32> to vector<2x32xf32>
    %254 = arith.mulf %253, %222 : vector<2x32xf32>
    %255 = arith.addf %250, %254 : vector<2x32xf32>
    %c6_i32 = arith.constant 6 : i32
    %256 = vector.broadcast %c6_i32 : i32 to vector<2x1xi32>
    %257 = arith.cmpi eq, %3, %256 : vector<2x1xi32>
    %258 = vector.shape_cast %257 : vector<2x1xi1> to vector<2x1xi1>
    %259 = vector.broadcast %258 : vector<2x1xi1> to vector<2x32xi1>
    %260 = arith.select %259, %255, %227 : vector<2x32xi1>, vector<2x32xf32>
    %cst_59 = arith.constant dense<0.000000e+00> : vector<2x64xf32>
    %261 = tpu.matmul %255, %60, %cst_59 {dimension_numbers = #tpu.dot_dimension_numbers<[1], [0], [0], [1], [0, 0, 1, 1], [], []>} : vector<2x32xf32>, vector<32x64xf32>, vector<2x64xf32> -> vector<2x64xf32>
    %262 = vector.broadcast %61 : vector<1x64xf32> to vector<2x64xf32>
    %263 = arith.addf %261, %262 : vector<2x64xf32>
    %264 = vector.extract_strided_slice %59 {offsets = [0, 6, 0], sizes = [2, 1, 32], strides = [1, 1, 1]} : vector<2x8x64xf32> to vector<2x1x32xf32>
    %265 = vector.shape_cast %264 : vector<2x1x32xf32> to vector<2x32xf32>
    %266 = vector.extract_strided_slice %263 {offsets = [0, 0], sizes = [2, 32], strides = [1, 1]} : vector<2x64xf32> to vector<2x32xf32>
    %267 = arith.addf %265, %266 : vector<2x32xf32>
    %cst_60 = arith.constant 0.000000e+00 : f32
    %268 = vector.broadcast %cst_60 : f32 to vector<2x32xf32>
    %269 = arith.subf %268, %267 : vector<2x32xf32>
    %270 = math.exp %269 : vector<2x32xf32>
    %cst_61 = arith.constant 1.000000e+00 : f32
    %271 = vector.broadcast %cst_61 : f32 to vector<2x32xf32>
    %272 = arith.addf %271, %270 : vector<2x32xf32>
    %cst_62 = arith.constant 1.000000e+00 : f32
    %273 = vector.broadcast %cst_62 : f32 to vector<2x32xf32>
    %274 = arith.divf %273, %272 : vector<2x32xf32>
    %275 = vector.extract_strided_slice %59 {offsets = [0, 6, 32], sizes = [2, 1, 32], strides = [1, 1, 1]} : vector<2x8x64xf32> to vector<2x1x32xf32>
    %276 = vector.shape_cast %275 : vector<2x1x32xf32> to vector<2x32xf32>
    %277 = vector.extract_strided_slice %263 {offsets = [0, 32], sizes = [2, 32], strides = [1, 1]} : vector<2x64xf32> to vector<2x32xf32>
    %278 = arith.mulf %274, %277 : vector<2x32xf32>
    %279 = arith.addf %276, %278 : vector<2x32xf32>
    %280 = math.tanh %279 : vector<2x32xf32>
    %281 = vector.extract_strided_slice %55 {offsets = [0, 6], sizes = [2, 1], strides = [1, 1]} : vector<2x8xf32> to vector<2x1xf32>
    %282 = vector.broadcast %281 : vector<2x1xf32> to vector<2x32xf32>
    %283 = arith.mulf %282, %280 : vector<2x32xf32>
    %cst_63 = arith.constant 1.000000e+00 : f32
    %284 = vector.broadcast %cst_63 : f32 to vector<2x1xf32>
    %285 = arith.subf %284, %281 : vector<2x1xf32>
    %286 = vector.broadcast %285 : vector<2x1xf32> to vector<2x32xf32>
    %287 = arith.mulf %286, %255 : vector<2x32xf32>
    %288 = arith.addf %283, %287 : vector<2x32xf32>
    %c7_i32 = arith.constant 7 : i32
    %289 = vector.broadcast %c7_i32 : i32 to vector<2x1xi32>
    %290 = arith.cmpi eq, %3, %289 : vector<2x1xi32>
    %291 = vector.shape_cast %290 : vector<2x1xi1> to vector<2x1xi1>
    %292 = vector.broadcast %291 : vector<2x1xi1> to vector<2x32xi1>
    %293 = arith.select %292, %288, %260 : vector<2x32xi1>, vector<2x32xf32>
    %cst_64 = arith.constant dense<0.000000e+00> : vector<2x64xf32>
    %294 = tpu.matmul %288, %60, %cst_64 {dimension_numbers = #tpu.dot_dimension_numbers<[1], [0], [0], [1], [0, 0, 1, 1], [], []>} : vector<2x32xf32>, vector<32x64xf32>, vector<2x64xf32> -> vector<2x64xf32>
    %295 = vector.broadcast %61 : vector<1x64xf32> to vector<2x64xf32>
    %296 = arith.addf %294, %295 : vector<2x64xf32>
    %297 = vector.extract_strided_slice %59 {offsets = [0, 7, 0], sizes = [2, 1, 32], strides = [1, 1, 1]} : vector<2x8x64xf32> to vector<2x1x32xf32>
    %298 = vector.shape_cast %297 : vector<2x1x32xf32> to vector<2x32xf32>
    %299 = vector.extract_strided_slice %296 {offsets = [0, 0], sizes = [2, 32], strides = [1, 1]} : vector<2x64xf32> to vector<2x32xf32>
    %300 = arith.addf %298, %299 : vector<2x32xf32>
    %cst_65 = arith.constant 0.000000e+00 : f32
    %301 = vector.broadcast %cst_65 : f32 to vector<2x32xf32>
    %302 = arith.subf %301, %300 : vector<2x32xf32>
    %303 = math.exp %302 : vector<2x32xf32>
    %cst_66 = arith.constant 1.000000e+00 : f32
    %304 = vector.broadcast %cst_66 : f32 to vector<2x32xf32>
    %305 = arith.addf %304, %303 : vector<2x32xf32>
    %cst_67 = arith.constant 1.000000e+00 : f32
    %306 = vector.broadcast %cst_67 : f32 to vector<2x32xf32>
    %307 = arith.divf %306, %305 : vector<2x32xf32>
    %308 = vector.extract_strided_slice %59 {offsets = [0, 7, 32], sizes = [2, 1, 32], strides = [1, 1, 1]} : vector<2x8x64xf32> to vector<2x1x32xf32>
    %309 = vector.shape_cast %308 : vector<2x1x32xf32> to vector<2x32xf32>
    %310 = vector.extract_strided_slice %296 {offsets = [0, 32], sizes = [2, 32], strides = [1, 1]} : vector<2x64xf32> to vector<2x32xf32>
    %311 = arith.mulf %307, %310 : vector<2x32xf32>
    %312 = arith.addf %309, %311 : vector<2x32xf32>
    %313 = math.tanh %312 : vector<2x32xf32>
    %314 = vector.extract_strided_slice %55 {offsets = [0, 7], sizes = [2, 1], strides = [1, 1]} : vector<2x8xf32> to vector<2x1xf32>
    %315 = vector.broadcast %314 : vector<2x1xf32> to vector<2x32xf32>
    %316 = arith.mulf %315, %313 : vector<2x32xf32>
    %cst_68 = arith.constant 1.000000e+00 : f32
    %317 = vector.broadcast %cst_68 : f32 to vector<2x1xf32>
    %318 = arith.subf %317, %314 : vector<2x1xf32>
    %319 = vector.broadcast %318 : vector<2x1xf32> to vector<2x32xf32>
    %320 = arith.mulf %319, %288 : vector<2x32xf32>
    %321 = arith.addf %316, %320 : vector<2x32xf32>
    %c8_i32 = arith.constant 8 : i32
    %322 = vector.broadcast %c8_i32 : i32 to vector<2x1xi32>
    %323 = arith.cmpi eq, %3, %322 : vector<2x1xi32>
    %324 = vector.shape_cast %323 : vector<2x1xi1> to vector<2x1xi1>
    %325 = vector.broadcast %324 : vector<2x1xi1> to vector<2x32xi1>
    %326 = arith.select %325, %321, %293 : vector<2x32xi1>, vector<2x32xf32>
    %c0_69 = arith.constant 0 : index
    %c0_70 = arith.constant 0 : index
    %327 = vector.load %arg11[%c0_69, %c0_70] : memref<96x32xf32, #tpu.memory_space<vmem>>, vector<96x32xf32>
    %328 = vector.extract_strided_slice %327 {offsets = [0, 0], sizes = [32, 32], strides = [1, 1]} : vector<96x32xf32> to vector<32x32xf32>
    %cst_71 = arith.constant dense<0.000000e+00> : vector<2x32xf32>
    %329 = tpu.matmul %2, %328, %cst_71 {dimension_numbers = #tpu.dot_dimension_numbers<[1], [0], [0], [1], [0, 0, 1, 1], [], []>} : vector<2x32xf32>, vector<32x32xf32>, vector<2x32xf32> -> vector<2x32xf32>
    %330 = vector.extract_strided_slice %327 {offsets = [32, 0], sizes = [32, 32], strides = [1, 1]} : vector<96x32xf32> to vector<32x32xf32>
    %cst_72 = arith.constant dense<0.000000e+00> : vector<2x32xf32>
    %331 = tpu.matmul %326, %330, %cst_72 {dimension_numbers = #tpu.dot_dimension_numbers<[1], [0], [0], [1], [0, 0, 1, 1], [], []>} : vector<2x32xf32>, vector<32x32xf32>, vector<2x32xf32> -> vector<2x32xf32>
    %332 = arith.addf %329, %331 : vector<2x32xf32>
    %333 = vector.extract_strided_slice %327 {offsets = [64, 0], sizes = [32, 32], strides = [1, 1]} : vector<96x32xf32> to vector<32x32xf32>
    %cst_73 = arith.constant dense<0.000000e+00> : vector<2x32xf32>
    %334 = tpu.matmul %1, %333, %cst_73 {dimension_numbers = #tpu.dot_dimension_numbers<[1], [0], [0], [1], [0, 0, 1, 1], [], []>} : vector<2x32xf32>, vector<32x32xf32>, vector<2x32xf32> -> vector<2x32xf32>
    %335 = arith.addf %332, %334 : vector<2x32xf32>
    %c0_74 = arith.constant 0 : index
    %c0_75 = arith.constant 0 : index
    %336 = vector.load %arg12[%c0_74, %c0_75] : memref<1x32xf32, #tpu.memory_space<vmem>>, vector<1x32xf32>
    %337 = vector.broadcast %336 : vector<1x32xf32> to vector<2x32xf32>
    %338 = arith.addf %335, %337 : vector<2x32xf32>
    %cst_76 = arith.constant 0.000000e+00 : f32
    %339 = vector.broadcast %cst_76 : f32 to vector<2x32xf32>
    %340 = arith.maximumf %338, %339 : vector<2x32xf32>
    %c0_77 = arith.constant 0 : index
    %c0_78 = arith.constant 0 : index
    %341 = vector.load %arg13[%c0_77, %c0_78] : memref<2x32xf32, #tpu.memory_space<vmem>>, vector<2x32xf32>
    tpu.vector_store %arg13[%c0_77, %c0_78], %340 {strides = array<i32>} : memref<2x32xf32, #tpu.memory_space<vmem>>, vector<2x32xf32>,
    return
  }
  func.func @transform_0(%arg0: i32) -> (i32, i32, i32) {
    %c0_i32 = arith.constant 0 : i32
    %c0_i32_0 = arith.constant 0 : i32
    %c0_i32_1 = arith.constant 0 : i32
    return %arg0, %c0_i32, %c0_i32_0 : i32, i32, i32
  }
  func.func @transform_1(%arg0: i32) -> (i32, i32) {
    %c0_i32 = arith.constant 0 : i32
    %c0_i32_0 = arith.constant 0 : i32
    return %arg0, %c0_i32 : i32, i32
  }
  func.func @transform_2(%arg0: i32) -> (i32, i32) {
    %c0_i32 = arith.constant 0 : i32
    %c0_i32_0 = arith.constant 0 : i32
    return %arg0, %c0_i32 : i32, i32
  }
  func.func @transform_3(%arg0: i32) -> (i32, i32) {
    %c0_i32 = arith.constant 0 : i32
    %c0_i32_0 = arith.constant 0 : i32
    return %arg0, %c0_i32 : i32, i32
  }
  func.func @transform_4(%arg0: i32) -> (i32, i32) {
    %c0_i32 = arith.constant 0 : i32
    %c0_i32_0 = arith.constant 0 : i32
    %c0_i32_1 = arith.constant 0 : i32
    return %c0_i32, %c0_i32_0 : i32, i32
  }
  func.func @transform_5(%arg0: i32) -> (i32, i32) {
    %c0_i32 = arith.constant 0 : i32
    %c0_i32_0 = arith.constant 0 : i32
    %c0_i32_1 = arith.constant 0 : i32
    return %c0_i32, %c0_i32_0 : i32, i32
  }
  func.func @transform_6(%arg0: i32) -> (i32, i32) {
    %c0_i32 = arith.constant 0 : i32
    %c0_i32_0 = arith.constant 0 : i32
    %c0_i32_1 = arith.constant 0 : i32
    return %c0_i32, %c0_i32_0 : i32, i32
  }
  func.func @transform_7(%arg0: i32) -> (i32, i32) {
    %c0_i32 = arith.constant 0 : i32
    %c0_i32_0 = arith.constant 0 : i32
    %c0_i32_1 = arith.constant 0 : i32
    return %c0_i32, %c0_i32_0 : i32, i32
  }
  func.func @transform_8(%arg0: i32) -> (i32, i32) {
    %c0_i32 = arith.constant 0 : i32
    %c0_i32_0 = arith.constant 0 : i32
    %c0_i32_1 = arith.constant 0 : i32
    return %c0_i32, %c0_i32_0 : i32, i32
  }
  func.func @transform_9(%arg0: i32) -> (i32, i32) {
    %c0_i32 = arith.constant 0 : i32
    %c0_i32_0 = arith.constant 0 : i32
    %c0_i32_1 = arith.constant 0 : i32
    return %c0_i32, %c0_i32_0 : i32, i32
  }
  func.func @transform_10(%arg0: i32) -> (i32, i32) {
    %c0_i32 = arith.constant 0 : i32
    %c0_i32_0 = arith.constant 0 : i32
    %c0_i32_1 = arith.constant 0 : i32
    return %c0_i32, %c0_i32_0 : i32, i32
  }
  func.func @transform_11(%arg0: i32) -> (i32, i32) {
    %c0_i32 = arith.constant 0 : i32
    %c0_i32_0 = arith.constant 0 : i32
    %c0_i32_1 = arith.constant 0 : i32
    return %c0_i32, %c0_i32_0 : i32, i32
  }
  func.func @transform_12(%arg0: i32) -> (i32, i32) {
    %c0_i32 = arith.constant 0 : i32
    %c0_i32_0 = arith.constant 0 : i32
    return %arg0, %c0_i32 : i32, i32
  }
}

</mosaic_0001>

<llo_original>
// kernel: tpu_custom_call.1
$region0: #{tpu_custom_call.1}
  #allocation0 [shape = 'u32[]', space=smem, size = 0x4, offset = 0x4, fixed_abs, tag = 'smem constant byte address 0x4 - core index']
  #allocation1 [shape = 'u32[144,128]{1,0:T(1,128)}', space=vmem, size = 0x12000, scoped, tag = 'internal scratch']
  %s0 = inlined_call_operand.vmem [shape: f32[2,8,32], index: 0, kind: input, shape index: {}]
  %s1 = inlined_call_operand.vmem [shape: f32[2,32], index: 1, kind: input, shape index: {}]
  %s2 = inlined_call_operand.vmem [shape: f32[2,32], index: 2, kind: input, shape index: {}]
  %s3 = inlined_call_operand.vmem [shape: s32[2,1], index: 3, kind: input, shape index: {}]
  %s4 = inlined_call_operand.vmem [shape: f32[128,64], index: 4, kind: input, shape index: {}]
  %s5 = inlined_call_operand.vmem [shape: f32[1,64], index: 5, kind: input, shape index: {}]
  %s6 = inlined_call_operand.vmem [shape: f32[1,64], index: 6, kind: input, shape index: {}]
  %s7 = inlined_call_operand.vmem [shape: f32[32,64], index: 7, kind: input, shape index: {}]
  %s8 = inlined_call_operand.vmem [shape: f32[32,64], index: 8, kind: input, shape index: {}]
  %s9 = inlined_call_operand.vmem [shape: f32[1,64], index: 9, kind: input, shape index: {}]
  %s10 = inlined_call_operand.vmem [shape: f32[96,32], index: 10, kind: input, shape index: {}]
  %s11 = inlined_call_operand.vmem [shape: f32[1,32], index: 11, kind: input, shape index: {}]
  %s12 = inlined_call_operand.hbm [shape: f32[2,32], index: 12, kind: output, shape index: {}]
  %s13 = sld [smem:[#allocation0]]
  $region58: #{tpu_custom_call.1} parent=0
    _
  %s15 = ssub.s32 1, %s13
  %s16 = scalar_select 0, %s15, %s13
  $region1: #{tpu_custom_call.1} parent=0
    #allocation2 [shape = 'u8[1024]{0}', space=vmem, size = 0x400, scoped, tag = 'output window, operand 0, single buffered']
    #allocation3 [shape = 's32[1]{0}', space=sflag, size = 0x4, scoped, tag = 'scoped memory for tpu_custom_call.1']
    %17 = vsyncpa [#allocation3], 0
    // Predicated region
    $region2: #{tpu_custom_call.1} parent=1 // pred_check
      _
    $region3: #{tpu_custom_call.1} parent=1 // pred_check_branch
      %19 = sbr.rel (0) target = $region5
    $region4: #{tpu_custom_call.1} parent=1 // pred_region
      _
    $region5: #{tpu_custom_call.1} parent=1 // pred_fallthru
      _
    // Predicated region
    $region6: #{tpu_custom_call.1} parent=1 // pred_check
      _
    $region7: #{tpu_custom_call.1} parent=1 // pred_check_branch
      %21 = sbr.rel (0) target = $region9
    $region8: #{tpu_custom_call.1} parent=1 // pred_region
      _
    $region9: #{tpu_custom_call.1} parent=1 // pred_fallthru
      _
    // Predicated region
    $region10: #{tpu_custom_call.1} parent=1 // pred_check
      _
    $region11: #{tpu_custom_call.1} parent=1 // pred_check_branch
      %23 = sbr.rel (0) target = $region13
    $region12: #{tpu_custom_call.1} parent=1 // pred_region
      _
    $region13: #{tpu_custom_call.1} parent=1 // pred_fallthru
      _
    // Predicated region
    $region14: #{tpu_custom_call.1} parent=1 // pred_check
      _
    $region15: #{tpu_custom_call.1} parent=1 // pred_check_branch
      %25 = sbr.rel (0) target = $region17
    $region16: #{tpu_custom_call.1} parent=1 // pred_region
      _
    $region17: #{tpu_custom_call.1} parent=1 // pred_fallthru
      _
    // Predicated region
    $region18: #{tpu_custom_call.1} parent=1 // pred_check
      _
    $region19: #{tpu_custom_call.1} parent=1 // pred_check_branch
      %27 = sbr.rel (0) target = $region21
    $region20: #{tpu_custom_call.1} parent=1 // pred_region
      _
    $region21: #{tpu_custom_call.1} parent=1 // pred_fallthru
      _
    // Predicated region
    $region22: #{tpu_custom_call.1} parent=1 // pred_check
      _
    $region23: #{tpu_custom_call.1} parent=1 // pred_check_branch
      %29 = sbr.rel (0) target = $region25
    $region24: #{tpu_custom_call.1} parent=1 // pred_region
      _
    $region25: #{tpu_custom_call.1} parent=1 // pred_fallthru
      _
    // Predicated region
    $region26: #{tpu_custom_call.1} parent=1 // pred_check
      _
    $region27: #{tpu_custom_call.1} parent=1 // pred_check_branch
      %31 = sbr.rel (0) target = $region29
    $region28: #{tpu_custom_call.1} parent=1 // pred_region
      _
    $region29: #{tpu_custom_call.1} parent=1 // pred_fallthru
      _
    // Predicated region
    $region30: #{tpu_custom_call.1} parent=1 // pred_check
      _
    $region31: #{tpu_custom_call.1} parent=1 // pred_check_branch
      %33 = sbr.rel (0) target = $region33
    $region32: #{tpu_custom_call.1} parent=1 // pred_region
      _
    $region33: #{tpu_custom_call.1} parent=1 // pred_fallthru
      _
    // Predicated region
    $region34: #{tpu_custom_call.1} parent=1 // pred_check
      _
    $region35: #{tpu_custom_call.1} parent=1 // pred_check_branch
      %35 = sbr.rel (0) target = $region37
    $region36: #{tpu_custom_call.1} parent=1 // pred_region
      _
    $region37: #{tpu_custom_call.1} parent=1 // pred_fallthru
      _
    // Predicated region
    $region38: #{tpu_custom_call.1} parent=1 // pred_check
      _
    $region39: #{tpu_custom_call.1} parent=1 // pred_check_branch
      %37 = sbr.rel (0) target = $region41
    $region40: #{tpu_custom_call.1} parent=1 // pred_region
      _
    $region41: #{tpu_custom_call.1} parent=1 // pred_fallthru
      _
    // Predicated region
    $region42: #{tpu_custom_call.1} parent=1 // pred_check
      _
    $region43: #{tpu_custom_call.1} parent=1 // pred_check_branch
      %39 = sbr.rel (0) target = $region45
    $region44: #{tpu_custom_call.1} parent=1 // pred_region
      _
    $region45: #{tpu_custom_call.1} parent=1 // pred_fallthru
      _
    // Predicated region
    $region46: #{tpu_custom_call.1} parent=1 // pred_check
      _
    $region47: #{tpu_custom_call.1} parent=1 // pred_check_branch
      %41 = sbr.rel (0) target = $region49
    $region48: #{tpu_custom_call.1} parent=1 // pred_region
      _
    $region49: #{tpu_custom_call.1} parent=1 // pred_fallthru
      _
    %v42 = vld [vmem:[%s0] sm:$0xff]
    %v43 = vld [vmem:[%s0 + $0x8] sm:$0xff]
    %v44 = vld [vmem:[%s1] sm:$0x3]
    %v45 = vld [vmem:[%s2] sm:$0x3]
    %v46 = vld [vmem:[%s3] sm:$0x3]
    %v49 = vunpack.c.l.s4 1966171168
    %v50 = vunpack.c.0.s8 %v49
    %v51 = vlaneseq
    %v52 = vshrl.u32 %v51, 7
    %v53 = vsub.s32 %v50, %v52
    %v54 = vrot.slane %v44, %v53
    %v55 = vcombine.high %v54, %v54
    %v57 = vunpack.c.l.s4 1966171168
    %v58 = vunpack.c.0.s8 %v57
    %v59 = vlaneseq
    %v60 = vshrl.u32 %v59, 7
    %v61 = vsub.s32 %v58, %v60
    %v62 = vrot.slane %v54, %v61
    %v64 = vunpack.c.l.s4 1966171168
    %v65 = vunpack.c.0.s8 %v64
    %v66 = vlaneseq
    %v67 = vshrl.u32 %v66, 7
    %v68 = vsub.s32 %v65, %v67
    %v69 = vrot.slane %v55, %v68
    %v72 = vunpack.c.l.s4 1966171168
    %v73 = vunpack.c.0.s8 %v72
    %v74 = vlaneseq
    %v75 = vshrl.u32 %v74, 7
    %v76 = vsub.s32 %v73, %v75
    %v77 = vrot.slane %v45, %v76
    %v78 = vcombine.high %v77, %v77
    %v80 = vunpack.c.l.s4 1966171168
    %v81 = vunpack.c.0.s8 %v80
    %v82 = vlaneseq
    %v83 = vshrl.u32 %v82, 7
    %v84 = vsub.s32 %v81, %v83
    %v85 = vrot.slane %v77, %v84
    %v87 = vunpack.c.l.s4 1966171168
    %v88 = vunpack.c.0.s8 %v87
    %v89 = vlaneseq
    %v90 = vshrl.u32 %v89, 7
    %v91 = vsub.s32 %v88, %v90
    %v92 = vrot.slane %v78, %v91
    %v93 = vld [vmem:[%s4] sm:$0xff]
    %v94 = vld [vmem:[%s4 + $0x8] sm:$0xff]
    %v95 = vld [vmem:[%s4 + $0x10] sm:$0xff]
    %v96 = vld [vmem:[%s4 + $0x18] sm:$0xff]
    %v97 = vld [vmem:[%s4 + $0x20] sm:$0xff]
    %v98 = vld [vmem:[%s4 + $0x28] sm:$0xff]
    %v99 = vld [vmem:[%s4 + $0x30] sm:$0xff]
    %v100 = vld [vmem:[%s4 + $0x38] sm:$0xff]
    %v101 = vld [vmem:[%s4 + $0x40] sm:$0xff]
    %v102 = vld [vmem:[%s4 + $0x48] sm:$0xff]
    %v103 = vld [vmem:[%s4 + $0x50] sm:$0xff]
    %v104 = vld [vmem:[%s4 + $0x58] sm:$0xff]
    %v105 = vld [vmem:[%s4 + $0x60] sm:$0xff]
    %v106 = vld [vmem:[%s4 + $0x68] sm:$0xff]
    %v107 = vld [vmem:[%s4 + $0x70] sm:$0xff]
    %v108 = vld [vmem:[%s4 + $0x78] sm:$0xff]
    %v109 = vlaneseq
    %v110 = vshrl.u32 %v109, 7
    %v111 = vsub.s32 0, %v110
    %v112 = vrot.slane %v62, %v111
    %v113 = vlaneseq
    %v114 = vshrl.u32 %v113, 7
    %v115 = vsub.s32 0, %v114
    %v116 = vrot.slane %v69, %v115
    %v119 = vmul.f32 %v42, %v112
    %v120 = vmul.f32 %v43, %v116
    %v121 = vlaneseq
    %v122 = vshrl.u32 %v121, 7
    %v123 = vsub.s32 0, %v122
    %v124 = vrot.slane %v85, %v123
    %v125 = vlaneseq
    %v126 = vshrl.u32 %v125, 7
    %v127 = vsub.s32 0, %v126
    %v128 = vrot.slane %v92, %v127
    %v131 = vmul.f32 %v42, %v124
    %v132 = vmul.f32 %v43, %v128
    %v133 = vsub.f32 %v42, %v112
    %v134 = vsub.f32 %v43, %v116
    %v135 = vand.u32 2147483647, %v133
    %v136 = vand.u32 2147483647, %v134
    %v137 = vsub.f32 %v42, %v124
    %v138 = vsub.f32 %v43, %v128
    %v139 = vand.u32 2147483647, %v137
    %v140 = vand.u32 2147483647, %v138
    %vm141 = vcmask 261120
    %v143 = vsel %vm141, %v131, 0
    %v146 = vsel %vm141, %v132, 0
    %148 = vmatprep.subr.mxu0 0.0
    %149 = vmatpush1.msra.mxu0 %v97
    %150 = vmatprep.subr.mxu0 0.0
    %151 = vmatpush1.msra.mxu0 %v98
    %152 = vmatprep.subr.mxu0 0.0
    %153 = vmatpush1.msra.mxu0 %v99
    %154 = vmatprep.subr.mxu0 0.0
    %155 = vmatpush1.msra.mxu0 %v100
    %156 = vmatprep.subr.mxu0 0.0
    %157 = vmatpush1.msra.mxu0 0.0
    %158 = vmatprep.subr.mxu0 0.0
    %159 = vmatpush1.msra.mxu0 0.0
    %160 = vmatprep.subr.mxu0 0.0
    %161 = vmatpush1.msra.mxu0 0.0
    %162 = vmatprep.subr.mxu0 0.0
    %163 = vmatpush1.msra.mxu0 0.0
    %164 = vmatprep.subr.mxu0 0.0
    %165 = vmatpush1.msra.mxu0 0.0
    %166 = vmatprep.subr.mxu0 0.0
    %167 = vmatpush1.msra.mxu0 0.0
    %168 = vmatprep.subr.mxu0 0.0
    %169 = vmatpush1.msra.mxu0 0.0
    %170 = vmatprep.subr.mxu0 0.0
    %171 = vmatpush1.msra.mxu0 0.0
    %172 = vmatprep.subr.mxu0 0.0
    %173 = vmatpush1.msra.mxu0 0.0
    %174 = vmatprep.subr.mxu0 0.0
    %175 = vmatpush1.msra.mxu0 0.0
    %176 = vmatprep.subr.mxu0 0.0
    %177 = vmatpush1.msra.mxu0 0.0
    %178 = vmatprep.subr.mxu0 0.0
    %179 = vmatpush1.msra.mxu0 0.0
    %180 = vmatprep.subr.mxu0 0.0
    %181 = vmatpush1.msra.mxu0 0.0
    %182 = vmatprep.subr.mxu0 0.0
    %183 = vmatpush1.msra.mxu0 0.0
    %184 = vmatprep.subr.mxu0 0.0
    %185 = vmatpush1.msra.mxu0 0.0
    %186 = vmatprep.subr.mxu0 0.0
    %187 = vmatpush1.msra.mxu0 0.0
    %188 = vmatprep.subr.mxu0 0.0
    %189 = vmatpush1.msra.mxu0 0.0
    %190 = vmatprep.subr.mxu0 0.0
    %191 = vmatpush1.msra.mxu0 0.0
    %192 = vmatprep.subr.mxu0 0.0
    %193 = vmatpush1.msra.mxu0 0.0
    %194 = vmatprep.subr.mxu0 0.0
    %195 = vmatpush1.msra.mxu0 0.0
    %196 = vmatprep.subr.mxu0 0.0
    %197 = vmatpush1.msra.mxu0 0.0
    %198 = vmatprep.subr.mxu0 0.0
    %199 = vmatpush1.msra.mxu0 0.0
    %200 = vmatprep.subr.mxu0 0.0
    %201 = vmatpush1.msra.mxu0 0.0
    %202 = vmatprep.subr.mxu0 0.0
    %203 = vmatpush1.msra.mxu0 0.0
    %204 = vmatprep.subr.mxu0 0.0
    %205 = vmatpush1.msra.mxu0 0.0
    %206 = vmatprep.subr.mxu0 0.0
    %207 = vmatpush1.msra.mxu0 0.0
    %208 = vmatprep.subr.mxu0 0.0
    %209 = vmatpush1.msra.mxu0 0.0
    %210 = vmatprep.subr.mxu0 0.0
    %211 = vmatpush1.msra.mxu0 0.0
    %212 = vmatprep.mubr.f32.mxu0 0.0
    %213 = vmatmul.mubr.f32.gmra.mrb[0].mxu0 %v143
    %v214 = vpop.f32.mrb[0].mxu0
    %v215 = vadd.f32 0.0, %v214
    %v216 = vpop.f32.mrb[0].mxu0
    %217 = vmatprep.mubr.f32.mxu0 0.0
    %218 = vmatmul.mubr.f32.gmra.mrb[0].mxu0 %v146
    %v219 = vpop.f32.mrb[0].mxu0
    %v220 = vadd.f32 0.0, %v219
    %v221 = vpop.f32.mrb[0].mxu0
    %222 = vdwg.mxu0
    %v224 = vsel %vm141, %v119, 0
    %v227 = vsel %vm141, %v120, 0
    %229 = vmatprep.subr.mxu0 0.0
    %230 = vmatpush1.msra.mxu0 %v93
    %231 = vmatprep.subr.mxu0 0.0
    %232 = vmatpush1.msra.mxu0 %v94
    %233 = vmatprep.subr.mxu0 0.0
    %234 = vmatpush1.msra.mxu0 %v95
    %235 = vmatprep.subr.mxu0 0.0
    %236 = vmatpush1.msra.mxu0 %v96
    %237 = vmatprep.subr.mxu0 0.0
    %238 = vmatpush1.msra.mxu0 0.0
    %239 = vmatprep.subr.mxu0 0.0
    %240 = vmatpush1.msra.mxu0 0.0
    %241 = vmatprep.subr.mxu0 0.0
    %242 = vmatpush1.msra.mxu0 0.0
    %243 = vmatprep.subr.mxu0 0.0
    %244 = vmatpush1.msra.mxu0 0.0
    %245 = vmatprep.subr.mxu0 0.0
    %246 = vmatpush1.msra.mxu0 0.0
    %247 = vmatprep.subr.mxu0 0.0
    %248 = vmatpush1.msra.mxu0 0.0
    %249 = vmatprep.subr.mxu0 0.0
    %250 = vmatpush1.msra.mxu0 0.0
    %251 = vmatprep.subr.mxu0 0.0
    %252 = vmatpush1.msra.mxu0 0.0
    %253 = vmatprep.subr.mxu0 0.0
    %254 = vmatpush1.msra.mxu0 0.0
    %255 = vmatprep.subr.mxu0 0.0
    %256 = vmatpush1.msra.mxu0 0.0
    %257 = vmatprep.subr.mxu0 0.0
    %258 = vmatpush1.msra.mxu0 0.0
    %259 = vmatprep.subr.mxu0 0.0
    %260 = vmatpush1.msra.mxu0 0.0
    %261 = vmatprep.subr.mxu0 0.0
    %262 = vmatpush1.msra.mxu0 0.0
    %263 = vmatprep.subr.mxu0 0.0
    %264 = vmatpush1.msra.mxu0 0.0
    %265 = vmatprep.subr.mxu0 0.0
    %266 = vmatpush1.msra.mxu0 0.0
    %267 = vmatprep.subr.mxu0 0.0
    %268 = vmatpush1.msra.mxu0 0.0
    %269 = vmatprep.subr.mxu0 0.0
    %270 = vmatpush1.msra.mxu0 0.0
    %271 = vmatprep.subr.mxu0 0.0
    %272 = vmatpush1.msra.mxu0 0.0
    %273 = vmatprep.subr.mxu0 0.0
    %274 = vmatpush1.msra.mxu0 0.0
    %275 = vmatprep.subr.mxu0 0.0
    %276 = vmatpush1.msra.mxu0 0.0
    %277 = vmatprep.subr.mxu0 0.0
    %278 = vmatpush1.msra.mxu0 0.0
    %279 = vmatprep.subr.mxu0 0.0
    %280 = vmatpush1.msra.mxu0 0.0
    %281 = vmatprep.subr.mxu0 0.0
    %282 = vmatpush1.msra.mxu0 0.0
    %283 = vmatprep.subr.mxu0 0.0
    %284 = vmatpush1.msra.mxu0 0.0
    %285 = vmatprep.subr.mxu0 0.0
    %286 = vmatpush1.msra.mxu0 0.0
    %287 = vmatprep.subr.mxu0 0.0
    %288 = vmatpush1.msra.mxu0 0.0
    %289 = vmatprep.subr.mxu0 0.0
    %290 = vmatpush1.msra.mxu0 0.0
    %291 = vmatprep.subr.mxu0 0.0
    %292 = vmatpush1.msra.mxu0 0.0
    %293 = vmatprep.mubr.f32.mxu0 0.0
    %294 = vmatmul.mubr.f32.gmra.mrb[0].mxu0 %v224
    %v295 = vpop.f32.mrb[0].mxu0
    %v296 = vadd.f32 %v215, %v295
    %v297 = vpop.f32.mrb[0].mxu0
    %298 = vmatprep.mubr.f32.mxu0 0.0
    %299 = vmatmul.mubr.f32.gmra.mrb[0].mxu0 %v227
    %v300 = vpop.f32.mrb[0].mxu0
    %v301 = vadd.f32 %v220, %v300
    %v302 = vpop.f32.mrb[0].mxu0
    %303 = vdwg.mxu0
    %v305 = vsel %vm141, %v135, 0
    %v308 = vsel %vm141, %v136, 0
    %310 = vmatprep.subr.mxu0 0.0
    %311 = vmatpush1.msra.mxu0 %v101
    %312 = vmatprep.subr.mxu0 0.0
    %313 = vmatpush1.msra.mxu0 %v102
    %314 = vmatprep.subr.mxu0 0.0
    %315 = vmatpush1.msra.mxu0 %v103
    %316 = vmatprep.subr.mxu0 0.0
    %317 = vmatpush1.msra.mxu0 %v104
    %318 = vmatprep.subr.mxu0 0.0
    %319 = vmatpush1.msra.mxu0 0.0
    %320 = vmatprep.subr.mxu0 0.0
    %321 = vmatpush1.msra.mxu0 0.0
    %322 = vmatprep.subr.mxu0 0.0
    %323 = vmatpush1.msra.mxu0 0.0
    %324 = vmatprep.subr.mxu0 0.0
    %325 = vmatpush1.msra.mxu0 0.0
    %326 = vmatprep.subr.mxu0 0.0
    %327 = vmatpush1.msra.mxu0 0.0
    %328 = vmatprep.subr.mxu0 0.0
    %329 = vmatpush1.msra.mxu0 0.0
    %330 = vmatprep.subr.mxu0 0.0
    %331 = vmatpush1.msra.mxu0 0.0
    %332 = vmatprep.subr.mxu0 0.0
    %333 = vmatpush1.msra.mxu0 0.0
    %334 = vmatprep.subr.mxu0 0.0
    %335 = vmatpush1.msra.mxu0 0.0
    %336 = vmatprep.subr.mxu0 0.0
    %337 = vmatpush1.msra.mxu0 0.0
    %338 = vmatprep.subr.mxu0 0.0
    %339 = vmatpush1.msra.mxu0 0.0
    %340 = vmatprep.subr.mxu0 0.0
    %341 = vmatpush1.msra.mxu0 0.0
    %342 = vmatprep.subr.mxu0 0.0
    %343 = vmatpush1.msra.mxu0 0.0
    %344 = vmatprep.subr.mxu0 0.0
    %345 = vmatpush1.msra.mxu0 0.0
    %346 = vmatprep.subr.mxu0 0.0
    %347 = vmatpush1.msra.mxu0 0.0
    %348 = vmatprep.subr.mxu0 0.0
    %349 = vmatpush1.msra.mxu0 0.0
    %350 = vmatprep.subr.mxu0 0.0
    %351 = vmatpush1.msra.mxu0 0.0
    %352 = vmatprep.subr.mxu0 0.0
    %353 = vmatpush1.msra.mxu0 0.0
    %354 = vmatprep.subr.mxu0 0.0
    %355 = vmatpush1.msra.mxu0 0.0
    %356 = vmatprep.subr.mxu0 0.0
    %357 = vmatpush1.msra.mxu0 0.0
    %358 = vmatprep.subr.mxu0 0.0
    %359 = vmatpush1.msra.mxu0 0.0
    %360 = vmatprep.subr.mxu0 0.0
    %361 = vmatpush1.msra.mxu0 0.0
    %362 = vmatprep.subr.mxu0 0.0
    %363 = vmatpush1.msra.mxu0 0.0
    %364 = vmatprep.subr.mxu0 0.0
    %365 = vmatpush1.msra.mxu0 0.0
    %366 = vmatprep.subr.mxu0 0.0
    %367 = vmatpush1.msra.mxu0 0.0
    %368 = vmatprep.subr.mxu0 0.0
    %369 = vmatpush1.msra.mxu0 0.0
    %370 = vmatprep.subr.mxu0 0.0
    %371 = vmatpush1.msra.mxu0 0.0
    %372 = vmatprep.subr.mxu0 0.0
    %373 = vmatpush1.msra.mxu0 0.0
    %374 = vmatprep.mubr.f32.mxu0 0.0
    %375 = vmatmul.mubr.f32.gmra.mrb[0].mxu0 %v305
    %v376 = vpop.f32.mrb[0].mxu0
    %v377 = vadd.f32 0.0, %v376
    %v378 = vpop.f32.mrb[0].mxu0
    %379 = vmatprep.mubr.f32.mxu0 0.0
    %380 = vmatmul.mubr.f32.gmra.mrb[0].mxu0 %v308
    %v381 = vpop.f32.mrb[0].mxu0
    %v382 = vadd.f32 0.0, %v381
    %v383 = vpop.f32.mrb[0].mxu0
    %384 = vdwg.mxu0
    %v385 = vadd.f32 %v296, %v377
    %v386 = vadd.f32 %v301, %v382
    %v388 = vsel %vm141, %v139, 0
    %v391 = vsel %vm141, %v140, 0
    %393 = vmatprep.subr.mxu0 0.0
    %394 = vmatpush1.msra.mxu0 %v105
    %395 = vmatprep.subr.mxu0 0.0
    %396 = vmatpush1.msra.mxu0 %v106
    %397 = vmatprep.subr.mxu0 0.0
    %398 = vmatpush1.msra.mxu0 %v107
    %399 = vmatprep.subr.mxu0 0.0
    %400 = vmatpush1.msra.mxu0 %v108
    %401 = vmatprep.subr.mxu0 0.0
    %402 = vmatpush1.msra.mxu0 0.0
    %403 = vmatprep.subr.mxu0 0.0
    %404 = vmatpush1.msra.mxu0 0.0
    %405 = vmatprep.subr.mxu0 0.0
    %406 = vmatpush1.msra.mxu0 0.0
    %407 = vmatprep.subr.mxu0 0.0
    %408 = vmatpush1.msra.mxu0 0.0
    %409 = vmatprep.subr.mxu0 0.0
    %410 = vmatpush1.msra.mxu0 0.0
    %411 = vmatprep.subr.mxu0 0.0
    %412 = vmatpush1.msra.mxu0 0.0
    %413 = vmatprep.subr.mxu0 0.0
    %414 = vmatpush1.msra.mxu0 0.0
    %415 = vmatprep.subr.mxu0 0.0
    %416 = vmatpush1.msra.mxu0 0.0
    %417 = vmatprep.subr.mxu0 0.0
    %418 = vmatpush1.msra.mxu0 0.0
    %419 = vmatprep.subr.mxu0 0.0
    %420 = vmatpush1.msra.mxu0 0.0
    %421 = vmatprep.subr.mxu0 0.0
    %422 = vmatpush1.msra.mxu0 0.0
    %423 = vmatprep.subr.mxu0 0.0
    %424 = vmatpush1.msra.mxu0 0.0
    %425 = vmatprep.subr.mxu0 0.0
    %426 = vmatpush1.msra.mxu0 0.0
    %427 = vmatprep.subr.mxu0 0.0
    %428 = vmatpush1.msra.mxu0 0.0
    %429 = vmatprep.subr.mxu0 0.0
    %430 = vmatpush1.msra.mxu0 0.0
    %431 = vmatprep.subr.mxu0 0.0
    %432 = vmatpush1.msra.mxu0 0.0
    %433 = vmatprep.subr.mxu0 0.0
    %434 = vmatpush1.msra.mxu0 0.0
    %435 = vmatprep.subr.mxu0 0.0
    %436 = vmatpush1.msra.mxu0 0.0
    %437 = vmatprep.subr.mxu0 0.0
    %438 = vmatpush1.msra.mxu0 0.0
    %439 = vmatprep.subr.mxu0 0.0
    %440 = vmatpush1.msra.mxu0 0.0
    %441 = vmatprep.subr.mxu0 0.0
    %442 = vmatpush1.msra.mxu0 0.0
    %443 = vmatprep.subr.mxu0 0.0
    %444 = vmatpush1.msra.mxu0 0.0
    %445 = vmatprep.subr.mxu0 0.0
    %446 = vmatpush1.msra.mxu0 0.0
    %447 = vmatprep.subr.mxu0 0.0
    %448 = vmatpush1.msra.mxu0 0.0
    %449 = vmatprep.subr.mxu0 0.0
    %450 = vmatpush1.msra.mxu0 0.0
    %451 = vmatprep.subr.mxu0 0.0
    %452 = vmatpush1.msra.mxu0 0.0
    %453 = vmatprep.subr.mxu0 0.0
    %454 = vmatpush1.msra.mxu0 0.0
    %455 = vmatprep.subr.mxu0 0.0
    %456 = vmatpush1.msra.mxu0 0.0
    %457 = vmatprep.mubr.f32.mxu0 0.0
    %458 = vmatmul.mubr.f32.gmra.mrb[0].mxu0 %v388
    %v459 = vpop.f32.mrb[0].mxu0
    %v460 = vadd.f32 0.0, %v459
    %v461 = vpop.f32.mrb[0].mxu0
    %462 = vmatprep.mubr.f32.mxu0 0.0
    %463 = vmatmul.mubr.f32.gmra.mrb[0].mxu0 %v391
    %v464 = vpop.f32.mrb[0].mxu0
    %v465 = vadd.f32 0.0, %v464
    %v466 = vpop.f32.mrb[0].mxu0
    %467 = vdwg.mxu0
    %v468 = vadd.f32 %v385, %v460
    %v469 = vadd.f32 %v386, %v465
    %v470 = vld [vmem:[%s5] sm:$0x1]
    %v472 = vlaneseq
    %v473 = vshrl.u32 %v472, 7
    %v474 = vsub.s32 0, %v473
    %v475 = vrot.slane %v470, %v474
    %v477 = vadd.f32 %v468, %v475
    %v478 = vadd.f32 %v469, %v475
    %v479 = vtanh.pop %v477
    %v480 = vtanh.pop %v478
    %v481 = vld [vmem:[%s6] sm:$0x1]
    %v483 = vlaneseq
    %v484 = vshrl.u32 %v483, 7
    %v485 = vsub.s32 0, %v484
    %v486 = vrot.slane %v481, %v485
    %v488 = vmul.f32 %v479, %v486
    %v489 = vmul.f32 %v480, %v486
    %vm490 = vcmask 523264
    %v491 = vsel %vm490, %v488, 0.0
    %492 = vadd.xlane.f32.xlu0 %v491
    %v493 = vpop.xlane.xlu0 %492
    %v494 = vsel %vm490, %v489, 0.0
    %495 = vadd.xlane.f32.xlu0 %v494
    %v496 = vpop.xlane.xlu0 %495
    %v497 = vlaneseq
    %v498 = vand.u32 %v497, 127
    %499 = vset.pattern.permute.xlu0 0
    %500 = vperm.xlu0 %499, %v46
    %v501 = vpop.permute.xlu0 %500
    %vm502 = vcmp.lt.s32.totalorder %v498, %v501
    %v505 = vlaneseq
    %v506 = vshrl.u32 %v505, 7
    %v507 = vsub.s32 %v498, %v506
    %v508 = vrot.slane %v493, %v507
    %v509 = vlaneseq
    %v510 = vshrl.u32 %v509, 7
    %v511 = vsub.s32 %v498, %v510
    %v512 = vrot.slane %v496, %v511
    %vm513 = vcmask 1041409
    %v514 = vsel %vm513, %v512, %v508
    %v516 = vsel %vm502, %v514, -inf
    %vm517 = vcmask 58368
    %v518 = vsel %vm517, %v516, -inf
    %519 = vmax.xlane.f32.xlu0 %v518
    %v520 = vpop.xlane.xlu0 %519
    %v521 = vsub.f32 %v516, %v520
    %v522 = vmul.f32 %v521, 1.442695
    %v523 = vpow.pop %v522
    %v524 = vsel %vm517, %v523, 0.0
    %525 = vadd.xlane.f32.xlu0 %v524
    %v526 = vpop.xlane.xlu0 %525
    %v527 = vrcp.pop %v526
    %v528 = vmul.f32 %v523, %v527
    %v529 = vld [vmem:[%s7] sm:$0xff]
    %v530 = vld [vmem:[%s7 + $0x8] sm:$0xff]
    %v531 = vld [vmem:[%s7 + $0x10] sm:$0xff]
    %v532 = vld [vmem:[%s7 + $0x18] sm:$0xff]
    %v534 = vsel %vm141, %v42, 0
    %v537 = vsel %vm141, %v43, 0
    %539 = vmatprep.subr.mxu0 0.0
    %540 = vmatpush1.msra.mxu0 %v529
    %541 = vmatprep.subr.mxu0 0.0
    %542 = vmatpush1.msra.mxu0 %v530
    %543 = vmatprep.subr.mxu0 0.0
    %544 = vmatpush1.msra.mxu0 %v531
    %545 = vmatprep.subr.mxu0 0.0
    %546 = vmatpush1.msra.mxu0 %v532
    %547 = vmatprep.subr.mxu0 0.0
    %548 = vmatpush1.msra.mxu0 0.0
    %549 = vmatprep.subr.mxu0 0.0
    %550 = vmatpush1.msra.mxu0 0.0
    %551 = vmatprep.subr.mxu0 0.0
    %552 = vmatpush1.msra.mxu0 0.0
    %553 = vmatprep.subr.mxu0 0.0
    %554 = vmatpush1.msra.mxu0 0.0
    %555 = vmatprep.subr.mxu0 0.0
    %556 = vmatpush1.msra.mxu0 0.0
    %557 = vmatprep.subr.mxu0 0.0
    %558 = vmatpush1.msra.mxu0 0.0
    %559 = vmatprep.subr.mxu0 0.0
    %560 = vmatpush1.msra.mxu0 0.0
    %561 = vmatprep.subr.mxu0 0.0
    %562 = vmatpush1.msra.mxu0 0.0
    %563 = vmatprep.subr.mxu0 0.0
    %564 = vmatpush1.msra.mxu0 0.0
    %565 = vmatprep.subr.mxu0 0.0
    %566 = vmatpush1.msra.mxu0 0.0
    %567 = vmatprep.subr.mxu0 0.0
    %568 = vmatpush1.msra.mxu0 0.0
    %569 = vmatprep.subr.mxu0 0.0
    %570 = vmatpush1.msra.mxu0 0.0
    %571 = vmatprep.subr.mxu0 0.0
    %572 = vmatpush1.msra.mxu0 0.0
    %573 = vmatprep.subr.mxu0 0.0
    %574 = vmatpush1.msra.mxu0 0.0
    %575 = vmatprep.subr.mxu0 0.0
    %576 = vmatpush1.msra.mxu0 0.0
    %577 = vmatprep.subr.mxu0 0.0
    %578 = vmatpush1.msra.mxu0 0.0
    %579 = vmatprep.subr.mxu0 0.0
    %580 = vmatpush1.msra.mxu0 0.0
    %581 = vmatprep.subr.mxu0 0.0
    %582 = vmatpush1.msra.mxu0 0.0
    %583 = vmatprep.subr.mxu0 0.0
    %584 = vmatpush1.msra.mxu0 0.0
    %585 = vmatprep.subr.mxu0 0.0
    %586 = vmatpush1.msra.mxu0 0.0
    %587 = vmatprep.subr.mxu0 0.0
    %588 = vmatpush1.msra.mxu0 0.0
    %589 = vmatprep.subr.mxu0 0.0
    %590 = vmatpush1.msra.mxu0 0.0
    %591 = vmatprep.subr.mxu0 0.0
    %592 = vmatpush1.msra.mxu0 0.0
    %593 = vmatprep.subr.mxu0 0.0
    %594 = vmatpush1.msra.mxu0 0.0
    %595 = vmatprep.subr.mxu0 0.0
    %596 = vmatpush1.msra.mxu0 0.0
    %597 = vmatprep.subr.mxu0 0.0
    %598 = vmatpush1.msra.mxu0 0.0
    %599 = vmatprep.subr.mxu0 0.0
    %600 = vmatpush1.msra.mxu0 0.0
    %601 = vmatprep.subr.mxu0 0.0
    %602 = vmatpush1.msra.mxu0 0.0
    %603 = vmatprep.mubr.f32.mxu0 0.0
    %604 = vmatmul.mubr.f32.gmra.mrb[0].mxu0 %v534
    %v605 = vpop.f32.mrb[0].mxu0
    %v606 = vadd.f32 0.0, %v605
    %v607 = vpop.f32.mrb[0].mxu0
    %608 = vmatprep.mubr.f32.mxu0 0.0
    %609 = vmatmul.mubr.f32.gmra.mrb[0].mxu0 %v537
    %v610 = vpop.f32.mrb[0].mxu0
    %v611 = vadd.f32 0.0, %v610
    %v612 = vpop.f32.mrb[0].mxu0
    %613 = vdwg.mxu0
    %v614 = vld [vmem:[%s8] sm:$0xff]
    %v615 = vld [vmem:[%s8 + $0x8] sm:$0xff]
    %v616 = vld [vmem:[%s8 + $0x10] sm:$0xff]
    %v617 = vld [vmem:[%s8 + $0x18] sm:$0xff]
    %v618 = vld [vmem:[%s9] sm:$0x1]
    %v620 = vlaneseq
    %v621 = vshrl.u32 %v620, 7
    %v622 = vsub.s32 0, %v621
    %v623 = vrot.slane %v618, %v622
    %v625 = vsel %vm141, %v45, 0
    %627 = vmatprep.subr.mxu0 0.0
    %628 = vmatpush1.msra.mxu0 %v614
    %629 = vmatprep.subr.mxu0 0.0
    %630 = vmatpush1.msra.mxu0 %v615
    %631 = vmatprep.subr.mxu0 0.0
    %632 = vmatpush1.msra.mxu0 %v616
    %633 = vmatprep.subr.mxu0 0.0
    %634 = vmatpush1.msra.mxu0 %v617
    %635 = vmatprep.subr.mxu0 0.0
    %636 = vmatpush1.msra.mxu0 0.0
    %637 = vmatprep.subr.mxu0 0.0
    %638 = vmatpush1.msra.mxu0 0.0
    %639 = vmatprep.subr.mxu0 0.0
    %640 = vmatpush1.msra.mxu0 0.0
    %641 = vmatprep.subr.mxu0 0.0
    %642 = vmatpush1.msra.mxu0 0.0
    %643 = vmatprep.subr.mxu0 0.0
    %644 = vmatpush1.msra.mxu0 0.0
    %645 = vmatprep.subr.mxu0 0.0
    %646 = vmatpush1.msra.mxu0 0.0
    %647 = vmatprep.subr.mxu0 0.0
    %648 = vmatpush1.msra.mxu0 0.0
    %649 = vmatprep.subr.mxu0 0.0
    %650 = vmatpush1.msra.mxu0 0.0
    %651 = vmatprep.subr.mxu0 0.0
    %652 = vmatpush1.msra.mxu0 0.0
    %653 = vmatprep.subr.mxu0 0.0
    %654 = vmatpush1.msra.mxu0 0.0
    %655 = vmatprep.subr.mxu0 0.0
    %656 = vmatpush1.msra.mxu0 0.0
    %657 = vmatprep.subr.mxu0 0.0
    %658 = vmatpush1.msra.mxu0 0.0
    %659 = vmatprep.subr.mxu0 0.0
    %660 = vmatpush1.msra.mxu0 0.0
    %661 = vmatprep.subr.mxu0 0.0
    %662 = vmatpush1.msra.mxu0 0.0
    %663 = vmatprep.subr.mxu0 0.0
    %664 = vmatpush1.msra.mxu0 0.0
    %665 = vmatprep.subr.mxu0 0.0
    %666 = vmatpush1.msra.mxu0 0.0
    %667 = vmatprep.subr.mxu0 0.0
    %668 = vmatpush1.msra.mxu0 0.0
    %669 = vmatprep.subr.mxu0 0.0
    %670 = vmatpush1.msra.mxu0 0.0
    %671 = vmatprep.subr.mxu0 0.0
    %672 = vmatpush1.msra.mxu0 0.0
    %673 = vmatprep.subr.mxu0 0.0
    %674 = vmatpush1.msra.mxu0 0.0
    %675 = vmatprep.subr.mxu0 0.0
    %676 = vmatpush1.msra.mxu0 0.0
    %677 = vmatprep.subr.mxu0 0.0
    %678 = vmatpush1.msra.mxu0 0.0
    %679 = vmatprep.subr.mxu0 0.0
    %680 = vmatpush1.msra.mxu0 0.0
    %681 = vmatprep.subr.mxu0 0.0
    %682 = vmatpush1.msra.mxu0 0.0
    %683 = vmatprep.subr.mxu0 0.0
    %684 = vmatpush1.msra.mxu0 0.0
    %685 = vmatprep.subr.mxu0 0.0
    %686 = vmatpush1.msra.mxu0 0.0
    %687 = vmatprep.subr.mxu0 0.0
    %688 = vmatpush1.msra.mxu0 0.0
    %689 = vmatprep.subr.mxu0 0.0
    %690 = vmatpush1.msra.mxu0 0.0
    %691 = vmatprep.mubr.f32.mxu0 0.0
    %692 = vmatmul.mubr.f32.gmra.mrb[0].mxu0 %v625
    %v693 = vpop.f32.mrb[0].mxu0
    %v694 = vadd.f32 %v623, %v693
    %v695 = vpop.f32.mrb[0].mxu0
    %696 = vdwg.mxu0
    %v698 = vrot.slane %v694, 1
    %v701 = vadd.f32 %v606, %v694
    %v702 = vadd.f32 %v611, %v698
    %v703 = vsub.f32 0.0, %v701
    %v704 = vsub.f32 0.0, %v702
    %v705 = vmul.f32 %v703, 1.442695
    %v706 = vpow.pop %v705
    %v707 = vmul.f32 %v704, 1.442695
    %v708 = vpow.pop %v707
    %v709 = vadd.f32 %v706, 1.0
    %v710 = vadd.f32 %v708, 1.0
    %v711 = vrcp.pop %v709
    %v712 = vmul.f32 1.0, %v711
    %v713 = vrcp.pop %v710
    %v714 = vmul.f32 1.0, %v713
    %715 = vrot.lane.b32.xlu0 %v694, 96
    %v716 = vpop.permute.xlu0 %715
    %717 = vrot.lane.b32.xlu0 %v698, 96
    %v718 = vpop.permute.xlu0 %717
    %v721 = vmul.f32 %v712, %v716
    %v722 = vmul.f32 %v714, %v718
    %725 = vrot.lane.b32.xlu0 %v721, 32
    %v726 = vpop.permute.xlu0 %725
    %727 = vrot.lane.b32.xlu0 %v722, 32
    %v728 = vpop.permute.xlu0 %727
    %v731 = vadd.f32 %v606, %v726
    %v732 = vadd.f32 %v611, %v728
    %v733 = vtanh.pop %v731
    %v734 = vtanh.pop %v732
    %736 = vset.pattern.permute.xlu0 0
    %737 = vperm.xlu0 %736, %v528
    %v738 = vpop.permute.xlu0 %737
    %v742 = vrot.slane %v734, 7
    %v743 = vsel %vm513, %v742, %v733
    %744 = vrot.lane.b32.xlu0 %v743, 96
    %v745 = vpop.permute.xlu0 %744
    %v747 = vmul.f32 %v738, %v745
    %v748 = vsub.f32 1.0, %v528
    %750 = vset.pattern.permute.xlu0 0
    %751 = vperm.xlu0 %750, %v748
    %v752 = vpop.permute.xlu0 %751
    %v754 = vmul.f32 %v752, %v45
    %v755 = vadd.f32 %v747, %v754
    %vm756 = vcmp.eq.s32.totalorder %v46, 1
    %v757 = vsel %vm756, 1, 0
    %758 = vset.pattern.permute.xlu0 0
    %759 = vperm.xlu0 %758, %v757
    %v760 = vpop.permute.xlu0 %759
    %vm761 = vcmp.eq.s32.totalorder %v760, 1
    %v762 = vsel %vm761, %v755, 0.0
    %v764 = vsel %vm141, %v755, 0
    %766 = vmatprep.subr.mxu0 0.0
    %767 = vmatpush1.msra.mxu0 %v614
    %768 = vmatprep.subr.mxu0 0.0
    %769 = vmatpush1.msra.mxu0 %v615
    %770 = vmatprep.subr.mxu0 0.0
    %771 = vmatpush1.msra.mxu0 %v616
    %772 = vmatprep.subr.mxu0 0.0
    %773 = vmatpush1.msra.mxu0 %v617
    %774 = vmatprep.subr.mxu0 0.0
    %775 = vmatpush1.msra.mxu0 0.0
    %776 = vmatprep.subr.mxu0 0.0
    %777 = vmatpush1.msra.mxu0 0.0
    %778 = vmatprep.subr.mxu0 0.0
    %779 = vmatpush1.msra.mxu0 0.0
    %780 = vmatprep.subr.mxu0 0.0
    %781 = vmatpush1.msra.mxu0 0.0
    %782 = vmatprep.subr.mxu0 0.0
    %783 = vmatpush1.msra.mxu0 0.0
    %784 = vmatprep.subr.mxu0 0.0
    %785 = vmatpush1.msra.mxu0 0.0
    %786 = vmatprep.subr.mxu0 0.0
    %787 = vmatpush1.msra.mxu0 0.0
    %788 = vmatprep.subr.mxu0 0.0
    %789 = vmatpush1.msra.mxu0 0.0
    %790 = vmatprep.subr.mxu0 0.0
    %791 = vmatpush1.msra.mxu0 0.0
    %792 = vmatprep.subr.mxu0 0.0
    %793 = vmatpush1.msra.mxu0 0.0
    %794 = vmatprep.subr.mxu0 0.0
    %795 = vmatpush1.msra.mxu0 0.0
    %796 = vmatprep.subr.mxu0 0.0
    %797 = vmatpush1.msra.mxu0 0.0
    %798 = vmatprep.subr.mxu0 0.0
    %799 = vmatpush1.msra.mxu0 0.0
    %800 = vmatprep.subr.mxu0 0.0
    %801 = vmatpush1.msra.mxu0 0.0
    %802 = vmatprep.subr.mxu0 0.0
    %803 = vmatpush1.msra.mxu0 0.0
    %804 = vmatprep.subr.mxu0 0.0
    %805 = vmatpush1.msra.mxu0 0.0
    %806 = vmatprep.subr.mxu0 0.0
    %807 = vmatpush1.msra.mxu0 0.0
    %808 = vmatprep.subr.mxu0 0.0
    %809 = vmatpush1.msra.mxu0 0.0
    %810 = vmatprep.subr.mxu0 0.0
    %811 = vmatpush1.msra.mxu0 0.0
    %812 = vmatprep.subr.mxu0 0.0
    %813 = vmatpush1.msra.mxu0 0.0
    %814 = vmatprep.subr.mxu0 0.0
    %815 = vmatpush1.msra.mxu0 0.0
    %816 = vmatprep.subr.mxu0 0.0
    %817 = vmatpush1.msra.mxu0 0.0
    %818 = vmatprep.subr.mxu0 0.0
    %819 = vmatpush1.msra.mxu0 0.0
    %820 = vmatprep.subr.mxu0 0.0
    %821 = vmatpush1.msra.mxu0 0.0
    %822 = vmatprep.subr.mxu0 0.0
    %823 = vmatpush1.msra.mxu0 0.0
    %824 = vmatprep.subr.mxu0 0.0
    %825 = vmatpush1.msra.mxu0 0.0
    %826 = vmatprep.subr.mxu0 0.0
    %827 = vmatpush1.msra.mxu0 0.0
    %828 = vmatprep.subr.mxu0 0.0
    %829 = vmatpush1.msra.mxu0 0.0
    %830 = vmatprep.mubr.f32.mxu0 0.0
    %831 = vmatmul.mubr.f32.gmra.mrb[0].mxu0 %v764
    %v832 = vpop.f32.mrb[0].mxu0
    %v833 = vadd.f32 %v623, %v832
    %v834 = vpop.f32.mrb[0].mxu0
    %835 = vdwg.mxu0
    %v837 = vrot.slane %v833, 7
    %v840 = vadd.f32 %v606, %v837
    %v841 = vadd.f32 %v611, %v833
    %v842 = vsub.f32 0.0, %v840
    %v843 = vsub.f32 0.0, %v841
    %v844 = vmul.f32 %v842, 1.442695
    %v845 = vpow.pop %v844
    %v846 = vmul.f32 %v843, 1.442695
    %v847 = vpow.pop %v846
    %v848 = vadd.f32 %v845, 1.0
    %v849 = vadd.f32 %v847, 1.0
    %v850 = vrcp.pop %v848
    %v851 = vmul.f32 1.0, %v850
    %v852 = vrcp.pop %v849
    %v853 = vmul.f32 1.0, %v852
    %854 = vrot.lane.b32.xlu0 %v837, 96
    %v855 = vpop.permute.xlu0 %854
    %856 = vrot.lane.b32.xlu0 %v833, 96
    %v857 = vpop.permute.xlu0 %856
    %v860 = vmul.f32 %v851, %v855
    %v861 = vmul.f32 %v853, %v857
    %864 = vrot.lane.b32.xlu0 %v860, 32
    %v865 = vpop.permute.xlu0 %864
    %866 = vrot.lane.b32.xlu0 %v861, 32
    %v867 = vpop.permute.xlu0 %866
    %v870 = vadd.f32 %v606, %v865
    %v871 = vadd.f32 %v611, %v867
    %v872 = vtanh.pop %v870
    %v873 = vtanh.pop %v871
    %874 = vset.pattern.permute.xlu0 1
    %875 = vperm.xlu0 %874, %v528
    %v876 = vpop.permute.xlu0 %875
    %v880 = vrot.slane %v872, 1
    %v881 = vsel %vm513, %v873, %v880
    %882 = vrot.lane.b32.xlu0 %v881, 96
    %v883 = vpop.permute.xlu0 %882
    %v885 = vmul.f32 %v876, %v883
    %886 = vset.pattern.permute.xlu0 1
    %887 = vperm.xlu0 %886, %v748
    %v888 = vpop.permute.xlu0 %887
    %v890 = vmul.f32 %v888, %v755
    %v891 = vadd.f32 %v885, %v890
    %vm892 = vcmp.eq.s32.totalorder %v46, 2
    %v893 = vsel %vm892, 1, 0
    %894 = vset.pattern.permute.xlu0 0
    %895 = vperm.xlu0 %894, %v893
    %v896 = vpop.permute.xlu0 %895
    %vm897 = vcmp.eq.s32.totalorder %v896, 1
    %v898 = vsel %vm897, %v891, %v762
    %v900 = vsel %vm141, %v891, 0
    %902 = vmatprep.subr.mxu0 0.0
    %903 = vmatpush1.msra.mxu0 %v614
    %904 = vmatprep.subr.mxu0 0.0
    %905 = vmatpush1.msra.mxu0 %v615
    %906 = vmatprep.subr.mxu0 0.0
    %907 = vmatpush1.msra.mxu0 %v616
    %908 = vmatprep.subr.mxu0 0.0
    %909 = vmatpush1.msra.mxu0 %v617
    %910 = vmatprep.subr.mxu0 0.0
    %911 = vmatpush1.msra.mxu0 0.0
    %912 = vmatprep.subr.mxu0 0.0
    %913 = vmatpush1.msra.mxu0 0.0
    %914 = vmatprep.subr.mxu0 0.0
    %915 = vmatpush1.msra.mxu0 0.0
    %916 = vmatprep.subr.mxu0 0.0
    %917 = vmatpush1.msra.mxu0 0.0
    %918 = vmatprep.subr.mxu0 0.0
    %919 = vmatpush1.msra.mxu0 0.0
    %920 = vmatprep.subr.mxu0 0.0
    %921 = vmatpush1.msra.mxu0 0.0
    %922 = vmatprep.subr.mxu0 0.0
    %923 = vmatpush1.msra.mxu0 0.0
    %924 = vmatprep.subr.mxu0 0.0
    %925 = vmatpush1.msra.mxu0 0.0
    %926 = vmatprep.subr.mxu0 0.0
    %927 = vmatpush1.msra.mxu0 0.0
    %928 = vmatprep.subr.mxu0 0.0
    %929 = vmatpush1.msra.mxu0 0.0
    %930 = vmatprep.subr.mxu0 0.0
    %931 = vmatpush1.msra.mxu0 0.0
    %932 = vmatprep.subr.mxu0 0.0
    %933 = vmatpush1.msra.mxu0 0.0
    %934 = vmatprep.subr.mxu0 0.0
    %935 = vmatpush1.msra.mxu0 0.0
    %936 = vmatprep.subr.mxu0 0.0
    %937 = vmatpush1.msra.mxu0 0.0
    %938 = vmatprep.subr.mxu0 0.0
    %939 = vmatpush1.msra.mxu0 0.0
    %940 = vmatprep.subr.mxu0 0.0
    %941 = vmatpush1.msra.mxu0 0.0
    %942 = vmatprep.subr.mxu0 0.0
    %943 = vmatpush1.msra.mxu0 0.0
    %944 = vmatprep.subr.mxu0 0.0
    %945 = vmatpush1.msra.mxu0 0.0
    %946 = vmatprep.subr.mxu0 0.0
    %947 = vmatpush1.msra.mxu0 0.0
    %948 = vmatprep.subr.mxu0 0.0
    %949 = vmatpush1.msra.mxu0 0.0
    %950 = vmatprep.subr.mxu0 0.0
    %951 = vmatpush1.msra.mxu0 0.0
    %952 = vmatprep.subr.mxu0 0.0
    %953 = vmatpush1.msra.mxu0 0.0
    %954 = vmatprep.subr.mxu0 0.0
    %955 = vmatpush1.msra.mxu0 0.0
    %956 = vmatprep.subr.mxu0 0.0
    %957 = vmatpush1.msra.mxu0 0.0
    %958 = vmatprep.subr.mxu0 0.0
    %959 = vmatpush1.msra.mxu0 0.0
    %960 = vmatprep.subr.mxu0 0.0
    %961 = vmatpush1.msra.mxu0 0.0
    %962 = vmatprep.subr.mxu0 0.0
    %963 = vmatpush1.msra.mxu0 0.0
    %964 = vmatprep.subr.mxu0 0.0
    %965 = vmatpush1.msra.mxu0 0.0
    %966 = vmatprep.mubr.f32.mxu0 0.0
    %967 = vmatmul.mubr.f32.gmra.mrb[0].mxu0 %v900
    %v968 = vpop.f32.mrb[0].mxu0
    %v969 = vadd.f32 %v623, %v968
    %v970 = vpop.f32.mrb[0].mxu0
    %971 = vdwg.mxu0
    %v973 = vrot.slane %v969, 6
    %v974 = vrot.slane %v969, 7
    %v977 = vadd.f32 %v606, %v973
    %v978 = vadd.f32 %v611, %v974
    %v979 = vsub.f32 0.0, %v977
    %v980 = vsub.f32 0.0, %v978
    %v981 = vmul.f32 %v979, 1.442695
    %v982 = vpow.pop %v981
    %v983 = vmul.f32 %v980, 1.442695
    %v984 = vpow.pop %v983
    %v985 = vadd.f32 %v982, 1.0
    %v986 = vadd.f32 %v984, 1.0
    %v987 = vrcp.pop %v985
    %v988 = vmul.f32 1.0, %v987
    %v989 = vrcp.pop %v986
    %v990 = vmul.f32 1.0, %v989
    %991 = vrot.lane.b32.xlu0 %v973, 96
    %v992 = vpop.permute.xlu0 %991
    %993 = vrot.lane.b32.xlu0 %v974, 96
    %v994 = vpop.permute.xlu0 %993
    %v997 = vmul.f32 %v988, %v992
    %v998 = vmul.f32 %v990, %v994
    %1001 = vrot.lane.b32.xlu0 %v997, 32
    %v1002 = vpop.permute.xlu0 %1001
    %1003 = vrot.lane.b32.xlu0 %v998, 32
    %v1004 = vpop.permute.xlu0 %1003
    %v1007 = vadd.f32 %v606, %v1002
    %v1008 = vadd.f32 %v611, %v1004
    %v1009 = vtanh.pop %v1007
    %v1010 = vtanh.pop %v1008
    %1011 = vset.pattern.permute.xlu0 2
    %1012 = vperm.xlu0 %1011, %v528
    %v1013 = vpop.permute.xlu0 %1012
    %v1017 = vrot.slane %v1009, 2
    %v1018 = vrot.slane %v1010, 1
    %v1019 = vsel %vm513, %v1018, %v1017
    %1020 = vrot.lane.b32.xlu0 %v1019, 96
    %v1021 = vpop.permute.xlu0 %1020
    %v1023 = vmul.f32 %v1013, %v1021
    %1024 = vset.pattern.permute.xlu0 2
    %1025 = vperm.xlu0 %1024, %v748
    %v1026 = vpop.permute.xlu0 %1025
    %v1028 = vmul.f32 %v1026, %v891
    %v1029 = vadd.f32 %v1023, %v1028
    %vm1030 = vcmp.eq.s32.totalorder %v46, 3
    %v1031 = vsel %vm1030, 1, 0
    %1032 = vset.pattern.permute.xlu0 0
    %1033 = vperm.xlu0 %1032, %v1031
    %v1034 = vpop.permute.xlu0 %1033
    %vm1035 = vcmp.eq.s32.totalorder %v1034, 1
    %v1036 = vsel %vm1035, %v1029, %v898
    %v1038 = vsel %vm141, %v1029, 0
    %1040 = vmatprep.subr.mxu0 0.0
    %1041 = vmatpush1.msra.mxu0 %v614
    %1042 = vmatprep.subr.mxu0 0.0
    %1043 = vmatpush1.msra.mxu0 %v615
    %1044 = vmatprep.subr.mxu0 0.0
    %1045 = vmatpush1.msra.mxu0 %v616
    %1046 = vmatprep.subr.mxu0 0.0
    %1047 = vmatpush1.msra.mxu0 %v617
    %1048 = vmatprep.subr.mxu0 0.0
    %1049 = vmatpush1.msra.mxu0 0.0
    %1050 = vmatprep.subr.mxu0 0.0
    %1051 = vmatpush1.msra.mxu0 0.0
    %1052 = vmatprep.subr.mxu0 0.0
    %1053 = vmatpush1.msra.mxu0 0.0
    %1054 = vmatprep.subr.mxu0 0.0
    %1055 = vmatpush1.msra.mxu0 0.0
    %1056 = vmatprep.subr.mxu0 0.0
    %1057 = vmatpush1.msra.mxu0 0.0
    %1058 = vmatprep.subr.mxu0 0.0
    %1059 = vmatpush1.msra.mxu0 0.0
    %1060 = vmatprep.subr.mxu0 0.0
    %1061 = vmatpush1.msra.mxu0 0.0
    %1062 = vmatprep.subr.mxu0 0.0
    %1063 = vmatpush1.msra.mxu0 0.0
    %1064 = vmatprep.subr.mxu0 0.0
    %1065 = vmatpush1.msra.mxu0 0.0
    %1066 = vmatprep.subr.mxu0 0.0
    %1067 = vmatpush1.msra.mxu0 0.0
    %1068 = vmatprep.subr.mxu0 0.0
    %1069 = vmatpush1.msra.mxu0 0.0
    %1070 = vmatprep.subr.mxu0 0.0
    %1071 = vmatpush1.msra.mxu0 0.0
    %1072 = vmatprep.subr.mxu0 0.0
    %1073 = vmatpush1.msra.mxu0 0.0
    %1074 = vmatprep.subr.mxu0 0.0
    %1075 = vmatpush1.msra.mxu0 0.0
    %1076 = vmatprep.subr.mxu0 0.0
    %1077 = vmatpush1.msra.mxu0 0.0
    %1078 = vmatprep.subr.mxu0 0.0
    %1079 = vmatpush1.msra.mxu0 0.0
    %1080 = vmatprep.subr.mxu0 0.0
    %1081 = vmatpush1.msra.mxu0 0.0
    %1082 = vmatprep.subr.mxu0 0.0
    %1083 = vmatpush1.msra.mxu0 0.0
    %1084 = vmatprep.subr.mxu0 0.0
    %1085 = vmatpush1.msra.mxu0 0.0
    %1086 = vmatprep.subr.mxu0 0.0
    %1087 = vmatpush1.msra.mxu0 0.0
    %1088 = vmatprep.subr.mxu0 0.0
    %1089 = vmatpush1.msra.mxu0 0.0
    %1090 = vmatprep.subr.mxu0 0.0
    %1091 = vmatpush1.msra.mxu0 0.0
    %1092 = vmatprep.subr.mxu0 0.0
    %1093 = vmatpush1.msra.mxu0 0.0
    %1094 = vmatprep.subr.mxu0 0.0
    %1095 = vmatpush1.msra.mxu0 0.0
    %1096 = vmatprep.subr.mxu0 0.0
    %1097 = vmatpush1.msra.mxu0 0.0
    %1098 = vmatprep.subr.mxu0 0.0
    %1099 = vmatpush1.msra.mxu0 0.0
    %1100 = vmatprep.subr.mxu0 0.0
    %1101 = vmatpush1.msra.mxu0 0.0
    %1102 = vmatprep.subr.mxu0 0.0
    %1103 = vmatpush1.msra.mxu0 0.0
    %1104 = vmatprep.mubr.f32.mxu0 0.0
    %1105 = vmatmul.mubr.f32.gmra.mrb[0].mxu0 %v1038
    %v1106 = vpop.f32.mrb[0].mxu0
    %v1107 = vadd.f32 %v623, %v1106
    %v1108 = vpop.f32.mrb[0].mxu0
    %1109 = vdwg.mxu0
    %v1111 = vrot.slane %v1107, 5
    %v1112 = vrot.slane %v1107, 6
    %v1115 = vadd.f32 %v606, %v1111
    %v1116 = vadd.f32 %v611, %v1112
    %v1117 = vsub.f32 0.0, %v1115
    %v1118 = vsub.f32 0.0, %v1116
    %v1119 = vmul.f32 %v1117, 1.442695
    %v1120 = vpow.pop %v1119
    %v1121 = vmul.f32 %v1118, 1.442695
    %v1122 = vpow.pop %v1121
    %v1123 = vadd.f32 %v1120, 1.0
    %v1124 = vadd.f32 %v1122, 1.0
    %v1125 = vrcp.pop %v1123
    %v1126 = vmul.f32 1.0, %v1125
    %v1127 = vrcp.pop %v1124
    %v1128 = vmul.f32 1.0, %v1127
    %1129 = vrot.lane.b32.xlu0 %v1111, 96
    %v1130 = vpop.permute.xlu0 %1129
    %1131 = vrot.lane.b32.xlu0 %v1112, 96
    %v1132 = vpop.permute.xlu0 %1131
    %v1135 = vmul.f32 %v1126, %v1130
    %v1136 = vmul.f32 %v1128, %v1132
    %1139 = vrot.lane.b32.xlu0 %v1135, 32
    %v1140 = vpop.permute.xlu0 %1139
    %1141 = vrot.lane.b32.xlu0 %v1136, 32
    %v1142 = vpop.permute.xlu0 %1141
    %v1145 = vadd.f32 %v606, %v1140
    %v1146 = vadd.f32 %v611, %v1142
    %v1147 = vtanh.pop %v1145
    %v1148 = vtanh.pop %v1146
    %1149 = vset.pattern.permute.xlu0 3
    %1150 = vperm.xlu0 %1149, %v528
    %v1151 = vpop.permute.xlu0 %1150
    %v1155 = vrot.slane %v1147, 3
    %v1156 = vrot.slane %v1148, 2
    %v1157 = vsel %vm513, %v1156, %v1155
    %1158 = vrot.lane.b32.xlu0 %v1157, 96
    %v1159 = vpop.permute.xlu0 %1158
    %v1161 = vmul.f32 %v1151, %v1159
    %1162 = vset.pattern.permute.xlu0 3
    %1163 = vperm.xlu0 %1162, %v748
    %v1164 = vpop.permute.xlu0 %1163
    %v1166 = vmul.f32 %v1164, %v1029
    %v1167 = vadd.f32 %v1161, %v1166
    %vm1168 = vcmp.eq.s32.totalorder %v46, 4
    %v1169 = vsel %vm1168, 1, 0
    %1170 = vset.pattern.permute.xlu0 0
    %1171 = vperm.xlu0 %1170, %v1169
    %v1172 = vpop.permute.xlu0 %1171
    %vm1173 = vcmp.eq.s32.totalorder %v1172, 1
    %v1174 = vsel %vm1173, %v1167, %v1036
    %v1176 = vsel %vm141, %v1167, 0
    %1178 = vmatprep.subr.mxu0 0.0
    %1179 = vmatpush1.msra.mxu0 %v614
    %1180 = vmatprep.subr.mxu0 0.0
    %1181 = vmatpush1.msra.mxu0 %v615
    %1182 = vmatprep.subr.mxu0 0.0
    %1183 = vmatpush1.msra.mxu0 %v616
    %1184 = vmatprep.subr.mxu0 0.0
    %1185 = vmatpush1.msra.mxu0 %v617
    %1186 = vmatprep.subr.mxu0 0.0
    %1187 = vmatpush1.msra.mxu0 0.0
    %1188 = vmatprep.subr.mxu0 0.0
    %1189 = vmatpush1.msra.mxu0 0.0
    %1190 = vmatprep.subr.mxu0 0.0
    %1191 = vmatpush1.msra.mxu0 0.0
    %1192 = vmatprep.subr.mxu0 0.0
    %1193 = vmatpush1.msra.mxu0 0.0
    %1194 = vmatprep.subr.mxu0 0.0
    %1195 = vmatpush1.msra.mxu0 0.0
    %1196 = vmatprep.subr.mxu0 0.0
    %1197 = vmatpush1.msra.mxu0 0.0
    %1198 = vmatprep.subr.mxu0 0.0
    %1199 = vmatpush1.msra.mxu0 0.0
    %1200 = vmatprep.subr.mxu0 0.0
    %1201 = vmatpush1.msra.mxu0 0.0
    %1202 = vmatprep.subr.mxu0 0.0
    %1203 = vmatpush1.msra.mxu0 0.0
    %1204 = vmatprep.subr.mxu0 0.0
    %1205 = vmatpush1.msra.mxu0 0.0
    %1206 = vmatprep.subr.mxu0 0.0
    %1207 = vmatpush1.msra.mxu0 0.0
    %1208 = vmatprep.subr.mxu0 0.0
    %1209 = vmatpush1.msra.mxu0 0.0
    %1210 = vmatprep.subr.mxu0 0.0
    %1211 = vmatpush1.msra.mxu0 0.0
    %1212 = vmatprep.subr.mxu0 0.0
    %1213 = vmatpush1.msra.mxu0 0.0
    %1214 = vmatprep.subr.mxu0 0.0
    %1215 = vmatpush1.msra.mxu0 0.0
    %1216 = vmatprep.subr.mxu0 0.0
    %1217 = vmatpush1.msra.mxu0 0.0
    %1218 = vmatprep.subr.mxu0 0.0
    %1219 = vmatpush1.msra.mxu0 0.0
    %1220 = vmatprep.subr.mxu0 0.0
    %1221 = vmatpush1.msra.mxu0 0.0
    %1222 = vmatprep.subr.mxu0 0.0
    %1223 = vmatpush1.msra.mxu0 0.0
    %1224 = vmatprep.subr.mxu0 0.0
    %1225 = vmatpush1.msra.mxu0 0.0
    %1226 = vmatprep.subr.mxu0 0.0
    %1227 = vmatpush1.msra.mxu0 0.0
    %1228 = vmatprep.subr.mxu0 0.0
    %1229 = vmatpush1.msra.mxu0 0.0
    %1230 = vmatprep.subr.mxu0 0.0
    %1231 = vmatpush1.msra.mxu0 0.0
    %1232 = vmatprep.subr.mxu0 0.0
    %1233 = vmatpush1.msra.mxu0 0.0
    %1234 = vmatprep.subr.mxu0 0.0
    %1235 = vmatpush1.msra.mxu0 0.0
    %1236 = vmatprep.subr.mxu0 0.0
    %1237 = vmatpush1.msra.mxu0 0.0
    %1238 = vmatprep.subr.mxu0 0.0
    %1239 = vmatpush1.msra.mxu0 0.0
    %1240 = vmatprep.subr.mxu0 0.0
    %1241 = vmatpush1.msra.mxu0 0.0
    %1242 = vmatprep.mubr.f32.mxu0 0.0
    %1243 = vmatmul.mubr.f32.gmra.mrb[0].mxu0 %v1176
    %v1244 = vpop.f32.mrb[0].mxu0
    %v1245 = vadd.f32 %v623, %v1244
    %v1246 = vpop.f32.mrb[0].mxu0
    %1247 = vdwg.mxu0
    %v1249 = vrot.slane %v1245, 4
    %v1250 = vrot.slane %v1245, 5
    %v1253 = vadd.f32 %v606, %v1249
    %v1254 = vadd.f32 %v611, %v1250
    %v1255 = vsub.f32 0.0, %v1253
    %v1256 = vsub.f32 0.0, %v1254
    %v1257 = vmul.f32 %v1255, 1.442695
    %v1258 = vpow.pop %v1257
    %v1259 = vmul.f32 %v1256, 1.442695
    %v1260 = vpow.pop %v1259
    %v1261 = vadd.f32 %v1258, 1.0
    %v1262 = vadd.f32 %v1260, 1.0
    %v1263 = vrcp.pop %v1261
    %v1264 = vmul.f32 1.0, %v1263
    %v1265 = vrcp.pop %v1262
    %v1266 = vmul.f32 1.0, %v1265
    %1267 = vrot.lane.b32.xlu0 %v1249, 96
    %v1268 = vpop.permute.xlu0 %1267
    %1269 = vrot.lane.b32.xlu0 %v1250, 96
    %v1270 = vpop.permute.xlu0 %1269
    %v1273 = vmul.f32 %v1264, %v1268
    %v1274 = vmul.f32 %v1266, %v1270
    %1277 = vrot.lane.b32.xlu0 %v1273, 32
    %v1278 = vpop.permute.xlu0 %1277
    %1279 = vrot.lane.b32.xlu0 %v1274, 32
    %v1280 = vpop.permute.xlu0 %1279
    %v1283 = vadd.f32 %v606, %v1278
    %v1284 = vadd.f32 %v611, %v1280
    %v1285 = vtanh.pop %v1283
    %v1286 = vtanh.pop %v1284
    %1287 = vset.pattern.permute.xlu0 4
    %1288 = vperm.xlu0 %1287, %v528
    %v1289 = vpop.permute.xlu0 %1288
    %v1293 = vrot.slane %v1285, 4
    %v1294 = vrot.slane %v1286, 3
    %v1295 = vsel %vm513, %v1294, %v1293
    %1296 = vrot.lane.b32.xlu0 %v1295, 96
    %v1297 = vpop.permute.xlu0 %1296
    %v1299 = vmul.f32 %v1289, %v1297
    %1300 = vset.pattern.permute.xlu0 4
    %1301 = vperm.xlu0 %1300, %v748
    %v1302 = vpop.permute.xlu0 %1301
    %v1304 = vmul.f32 %v1302, %v1167
    %v1305 = vadd.f32 %v1299, %v1304
    %vm1306 = vcmp.eq.s32.totalorder %v46, 5
    %v1307 = vsel %vm1306, 1, 0
    %1308 = vset.pattern.permute.xlu0 0
    %1309 = vperm.xlu0 %1308, %v1307
    %v1310 = vpop.permute.xlu0 %1309
    %vm1311 = vcmp.eq.s32.totalorder %v1310, 1
    %v1312 = vsel %vm1311, %v1305, %v1174
    %v1314 = vsel %vm141, %v1305, 0
    %1316 = vmatprep.subr.mxu0 0.0
    %1317 = vmatpush1.msra.mxu0 %v614
    %1318 = vmatprep.subr.mxu0 0.0
    %1319 = vmatpush1.msra.mxu0 %v615
    %1320 = vmatprep.subr.mxu0 0.0
    %1321 = vmatpush1.msra.mxu0 %v616
    %1322 = vmatprep.subr.mxu0 0.0
    %1323 = vmatpush1.msra.mxu0 %v617
    %1324 = vmatprep.subr.mxu0 0.0
    %1325 = vmatpush1.msra.mxu0 0.0
    %1326 = vmatprep.subr.mxu0 0.0
    %1327 = vmatpush1.msra.mxu0 0.0
    %1328 = vmatprep.subr.mxu0 0.0
    %1329 = vmatpush1.msra.mxu0 0.0
    %1330 = vmatprep.subr.mxu0 0.0
    %1331 = vmatpush1.msra.mxu0 0.0
    %1332 = vmatprep.subr.mxu0 0.0
    %1333 = vmatpush1.msra.mxu0 0.0
    %1334 = vmatprep.subr.mxu0 0.0
    %1335 = vmatpush1.msra.mxu0 0.0
    %1336 = vmatprep.subr.mxu0 0.0
    %1337 = vmatpush1.msra.mxu0 0.0
    %1338 = vmatprep.subr.mxu0 0.0
    %1339 = vmatpush1.msra.mxu0 0.0
    %1340 = vmatprep.subr.mxu0 0.0
    %1341 = vmatpush1.msra.mxu0 0.0
    %1342 = vmatprep.subr.mxu0 0.0
    %1343 = vmatpush1.msra.mxu0 0.0
    %1344 = vmatprep.subr.mxu0 0.0
    %1345 = vmatpush1.msra.mxu0 0.0
    %1346 = vmatprep.subr.mxu0 0.0
    %1347 = vmatpush1.msra.mxu0 0.0
    %1348 = vmatprep.subr.mxu0 0.0
    %1349 = vmatpush1.msra.mxu0 0.0
    %1350 = vmatprep.subr.mxu0 0.0
    %1351 = vmatpush1.msra.mxu0 0.0
    %1352 = vmatprep.subr.mxu0 0.0
    %1353 = vmatpush1.msra.mxu0 0.0
    %1354 = vmatprep.subr.mxu0 0.0
    %1355 = vmatpush1.msra.mxu0 0.0
    %1356 = vmatprep.subr.mxu0 0.0
    %1357 = vmatpush1.msra.mxu0 0.0
    %1358 = vmatprep.subr.mxu0 0.0
    %1359 = vmatpush1.msra.mxu0 0.0
    %1360 = vmatprep.subr.mxu0 0.0
    %1361 = vmatpush1.msra.mxu0 0.0
    %1362 = vmatprep.subr.mxu0 0.0
    %1363 = vmatpush1.msra.mxu0 0.0
    %1364 = vmatprep.subr.mxu0 0.0
    %1365 = vmatpush1.msra.mxu0 0.0
    %1366 = vmatprep.subr.mxu0 0.0
    %1367 = vmatpush1.msra.mxu0 0.0
    %1368 = vmatprep.subr.mxu0 0.0
    %1369 = vmatpush1.msra.mxu0 0.0
    %1370 = vmatprep.subr.mxu0 0.0
    %1371 = vmatpush1.msra.mxu0 0.0
    %1372 = vmatprep.subr.mxu0 0.0
    %1373 = vmatpush1.msra.mxu0 0.0
    %1374 = vmatprep.subr.mxu0 0.0
    %1375 = vmatpush1.msra.mxu0 0.0
    %1376 = vmatprep.subr.mxu0 0.0
    %1377 = vmatpush1.msra.mxu0 0.0
    %1378 = vmatprep.subr.mxu0 0.0
    %1379 = vmatpush1.msra.mxu0 0.0
    %1380 = vmatprep.mubr.f32.mxu0 0.0
    %1381 = vmatmul.mubr.f32.gmra.mrb[0].mxu0 %v1314
    %v1382 = vpop.f32.mrb[0].mxu0
    %v1383 = vadd.f32 %v623, %v1382
    %v1384 = vpop.f32.mrb[0].mxu0
    %1385 = vdwg.mxu0
    %v1387 = vrot.slane %v1383, 3
    %v1388 = vrot.slane %v1383, 4
    %v1391 = vadd.f32 %v606, %v1387
    %v1392 = vadd.f32 %v611, %v1388
    %v1393 = vsub.f32 0.0, %v1391
    %v1394 = vsub.f32 0.0, %v1392
    %v1395 = vmul.f32 %v1393, 1.442695
    %v1396 = vpow.pop %v1395
    %v1397 = vmul.f32 %v1394, 1.442695
    %v1398 = vpow.pop %v1397
    %v1399 = vadd.f32 %v1396, 1.0
    %v1400 = vadd.f32 %v1398, 1.0
    %v1401 = vrcp.pop %v1399
    %v1402 = vmul.f32 1.0, %v1401
    %v1403 = vrcp.pop %v1400
    %v1404 = vmul.f32 1.0, %v1403
    %1405 = vrot.lane.b32.xlu0 %v1387, 96
    %v1406 = vpop.permute.xlu0 %1405
    %1407 = vrot.lane.b32.xlu0 %v1388, 96
    %v1408 = vpop.permute.xlu0 %1407
    %v1411 = vmul.f32 %v1402, %v1406
    %v1412 = vmul.f32 %v1404, %v1408
    %1415 = vrot.lane.b32.xlu0 %v1411, 32
    %v1416 = vpop.permute.xlu0 %1415
    %1417 = vrot.lane.b32.xlu0 %v1412, 32
    %v1418 = vpop.permute.xlu0 %1417
    %v1421 = vadd.f32 %v606, %v1416
    %v1422 = vadd.f32 %v611, %v1418
    %v1423 = vtanh.pop %v1421
    %v1424 = vtanh.pop %v1422
    %1425 = vset.pattern.permute.xlu0 5
    %1426 = vperm.xlu0 %1425, %v528
    %v1427 = vpop.permute.xlu0 %1426
    %v1431 = vrot.slane %v1423, 5
    %v1432 = vrot.slane %v1424, 4
    %v1433 = vsel %vm513, %v1432, %v1431
    %1434 = vrot.lane.b32.xlu0 %v1433, 96
    %v1435 = vpop.permute.xlu0 %1434
    %v1437 = vmul.f32 %v1427, %v1435
    %1438 = vset.pattern.permute.xlu0 5
    %1439 = vperm.xlu0 %1438, %v748
    %v1440 = vpop.permute.xlu0 %1439
    %v1442 = vmul.f32 %v1440, %v1305
    %v1443 = vadd.f32 %v1437, %v1442
    %vm1444 = vcmp.eq.s32.totalorder %v46, 6
    %v1445 = vsel %vm1444, 1, 0
    %1446 = vset.pattern.permute.xlu0 0
    %1447 = vperm.xlu0 %1446, %v1445
    %v1448 = vpop.permute.xlu0 %1447
    %vm1449 = vcmp.eq.s32.totalorder %v1448, 1
    %v1450 = vsel %vm1449, %v1443, %v1312
    %v1452 = vsel %vm141, %v1443, 0
    %1454 = vmatprep.subr.mxu0 0.0
    %1455 = vmatpush1.msra.mxu0 %v614
    %1456 = vmatprep.subr.mxu0 0.0
    %1457 = vmatpush1.msra.mxu0 %v615
    %1458 = vmatprep.subr.mxu0 0.0
    %1459 = vmatpush1.msra.mxu0 %v616
    %1460 = vmatprep.subr.mxu0 0.0
    %1461 = vmatpush1.msra.mxu0 %v617
    %1462 = vmatprep.subr.mxu0 0.0
    %1463 = vmatpush1.msra.mxu0 0.0
    %1464 = vmatprep.subr.mxu0 0.0
    %1465 = vmatpush1.msra.mxu0 0.0
    %1466 = vmatprep.subr.mxu0 0.0
    %1467 = vmatpush1.msra.mxu0 0.0
    %1468 = vmatprep.subr.mxu0 0.0
    %1469 = vmatpush1.msra.mxu0 0.0
    %1470 = vmatprep.subr.mxu0 0.0
    %1471 = vmatpush1.msra.mxu0 0.0
    %1472 = vmatprep.subr.mxu0 0.0
    %1473 = vmatpush1.msra.mxu0 0.0
    %1474 = vmatprep.subr.mxu0 0.0
    %1475 = vmatpush1.msra.mxu0 0.0
    %1476 = vmatprep.subr.mxu0 0.0
    %1477 = vmatpush1.msra.mxu0 0.0
    %1478 = vmatprep.subr.mxu0 0.0
    %1479 = vmatpush1.msra.mxu0 0.0
    %1480 = vmatprep.subr.mxu0 0.0
    %1481 = vmatpush1.msra.mxu0 0.0
    %1482 = vmatprep.subr.mxu0 0.0
    %1483 = vmatpush1.msra.mxu0 0.0
    %1484 = vmatprep.subr.mxu0 0.0
    %1485 = vmatpush1.msra.mxu0 0.0
    %1486 = vmatprep.subr.mxu0 0.0
    %1487 = vmatpush1.msra.mxu0 0.0
    %1488 = vmatprep.subr.mxu0 0.0
    %1489 = vmatpush1.msra.mxu0 0.0
    %1490 = vmatprep.subr.mxu0 0.0
    %1491 = vmatpush1.msra.mxu0 0.0
    %1492 = vmatprep.subr.mxu0 0.0
    %1493 = vmatpush1.msra.mxu0 0.0
    %1494 = vmatprep.subr.mxu0 0.0
    %1495 = vmatpush1.msra.mxu0 0.0
    %1496 = vmatprep.subr.mxu0 0.0
    %1497 = vmatpush1.msra.mxu0 0.0
    %1498 = vmatprep.subr.mxu0 0.0
    %1499 = vmatpush1.msra.mxu0 0.0
    %1500 = vmatprep.subr.mxu0 0.0
    %1501 = vmatpush1.msra.mxu0 0.0
    %1502 = vmatprep.subr.mxu0 0.0
    %1503 = vmatpush1.msra.mxu0 0.0
    %1504 = vmatprep.subr.mxu0 0.0
    %1505 = vmatpush1.msra.mxu0 0.0
    %1506 = vmatprep.subr.mxu0 0.0
    %1507 = vmatpush1.msra.mxu0 0.0
    %1508 = vmatprep.subr.mxu0 0.0
    %1509 = vmatpush1.msra.mxu0 0.0
    %1510 = vmatprep.subr.mxu0 0.0
    %1511 = vmatpush1.msra.mxu0 0.0
    %1512 = vmatprep.subr.mxu0 0.0
    %1513 = vmatpush1.msra.mxu0 0.0
    %1514 = vmatprep.subr.mxu0 0.0
    %1515 = vmatpush1.msra.mxu0 0.0
    %1516 = vmatprep.subr.mxu0 0.0
    %1517 = vmatpush1.msra.mxu0 0.0
    %1518 = vmatprep.mubr.f32.mxu0 0.0
    %1519 = vmatmul.mubr.f32.gmra.mrb[0].mxu0 %v1452
    %v1520 = vpop.f32.mrb[0].mxu0
    %v1521 = vadd.f32 %v623, %v1520
    %v1522 = vpop.f32.mrb[0].mxu0
    %1523 = vdwg.mxu0
    %v1525 = vrot.slane %v1521, 2
    %v1526 = vrot.slane %v1521, 3
    %v1529 = vadd.f32 %v606, %v1525
    %v1530 = vadd.f32 %v611, %v1526
    %v1531 = vsub.f32 0.0, %v1529
    %v1532 = vsub.f32 0.0, %v1530
    %v1533 = vmul.f32 %v1531, 1.442695
    %v1534 = vpow.pop %v1533
    %v1535 = vmul.f32 %v1532, 1.442695
    %v1536 = vpow.pop %v1535
    %v1537 = vadd.f32 %v1534, 1.0
    %v1538 = vadd.f32 %v1536, 1.0
    %v1539 = vrcp.pop %v1537
    %v1540 = vmul.f32 1.0, %v1539
    %v1541 = vrcp.pop %v1538
    %v1542 = vmul.f32 1.0, %v1541
    %1543 = vrot.lane.b32.xlu0 %v1525, 96
    %v1544 = vpop.permute.xlu0 %1543
    %1545 = vrot.lane.b32.xlu0 %v1526, 96
    %v1546 = vpop.permute.xlu0 %1545
    %v1549 = vmul.f32 %v1540, %v1544
    %v1550 = vmul.f32 %v1542, %v1546
    %1553 = vrot.lane.b32.xlu0 %v1549, 32
    %v1554 = vpop.permute.xlu0 %1553
    %1555 = vrot.lane.b32.xlu0 %v1550, 32
    %v1556 = vpop.permute.xlu0 %1555
    %v1559 = vadd.f32 %v606, %v1554
    %v1560 = vadd.f32 %v611, %v1556
    %v1561 = vtanh.pop %v1559
    %v1562 = vtanh.pop %v1560
    %1563 = vset.pattern.permute.xlu0 6
    %1564 = vperm.xlu0 %1563, %v528
    %v1565 = vpop.permute.xlu0 %1564
    %v1569 = vrot.slane %v1561, 6
    %v1570 = vrot.slane %v1562, 5
    %v1571 = vsel %vm513, %v1570, %v1569
    %1572 = vrot.lane.b32.xlu0 %v1571, 96
    %v1573 = vpop.permute.xlu0 %1572
    %v1575 = vmul.f32 %v1565, %v1573
    %1576 = vset.pattern.permute.xlu0 6
    %1577 = vperm.xlu0 %1576, %v748
    %v1578 = vpop.permute.xlu0 %1577
    %v1580 = vmul.f32 %v1578, %v1443
    %v1581 = vadd.f32 %v1575, %v1580
    %vm1582 = vcmp.eq.s32.totalorder %v46, 7
    %v1583 = vsel %vm1582, 1, 0
    %1584 = vset.pattern.permute.xlu0 0
    %1585 = vperm.xlu0 %1584, %v1583
    %v1586 = vpop.permute.xlu0 %1585
    %vm1587 = vcmp.eq.s32.totalorder %v1586, 1
    %v1588 = vsel %vm1587, %v1581, %v1450
    %v1590 = vsel %vm141, %v1581, 0
    %1592 = vmatprep.subr.mxu0 0.0
    %1593 = vmatpush1.msra.mxu0 %v614
    %1594 = vmatprep.subr.mxu0 0.0
    %1595 = vmatpush1.msra.mxu0 %v615
    %1596 = vmatprep.subr.mxu0 0.0
    %1597 = vmatpush1.msra.mxu0 %v616
    %1598 = vmatprep.subr.mxu0 0.0
    %1599 = vmatpush1.msra.mxu0 %v617
    %1600 = vmatprep.subr.mxu0 0.0
    %1601 = vmatpush1.msra.mxu0 0.0
    %1602 = vmatprep.subr.mxu0 0.0
    %1603 = vmatpush1.msra.mxu0 0.0
    %1604 = vmatprep.subr.mxu0 0.0
    %1605 = vmatpush1.msra.mxu0 0.0
    %1606 = vmatprep.subr.mxu0 0.0
    %1607 = vmatpush1.msra.mxu0 0.0
    %1608 = vmatprep.subr.mxu0 0.0
    %1609 = vmatpush1.msra.mxu0 0.0
    %1610 = vmatprep.subr.mxu0 0.0
    %1611 = vmatpush1.msra.mxu0 0.0
    %1612 = vmatprep.subr.mxu0 0.0
    %1613 = vmatpush1.msra.mxu0 0.0
    %1614 = vmatprep.subr.mxu0 0.0
    %1615 = vmatpush1.msra.mxu0 0.0
    %1616 = vmatprep.subr.mxu0 0.0
    %1617 = vmatpush1.msra.mxu0 0.0
    %1618 = vmatprep.subr.mxu0 0.0
    %1619 = vmatpush1.msra.mxu0 0.0
    %1620 = vmatprep.subr.mxu0 0.0
    %1621 = vmatpush1.msra.mxu0 0.0
    %1622 = vmatprep.subr.mxu0 0.0
    %1623 = vmatpush1.msra.mxu0 0.0
    %1624 = vmatprep.subr.mxu0 0.0
    %1625 = vmatpush1.msra.mxu0 0.0
    %1626 = vmatprep.subr.mxu0 0.0
    %1627 = vmatpush1.msra.mxu0 0.0
    %1628 = vmatprep.subr.mxu0 0.0
    %1629 = vmatpush1.msra.mxu0 0.0
    %1630 = vmatprep.subr.mxu0 0.0
    %1631 = vmatpush1.msra.mxu0 0.0
    %1632 = vmatprep.subr.mxu0 0.0
    %1633 = vmatpush1.msra.mxu0 0.0
    %1634 = vmatprep.subr.mxu0 0.0
    %1635 = vmatpush1.msra.mxu0 0.0
    %1636 = vmatprep.subr.mxu0 0.0
    %1637 = vmatpush1.msra.mxu0 0.0
    %1638 = vmatprep.subr.mxu0 0.0
    %1639 = vmatpush1.msra.mxu0 0.0
    %1640 = vmatprep.subr.mxu0 0.0
    %1641 = vmatpush1.msra.mxu0 0.0
    %1642 = vmatprep.subr.mxu0 0.0
    %1643 = vmatpush1.msra.mxu0 0.0
    %1644 = vmatprep.subr.mxu0 0.0
    %1645 = vmatpush1.msra.mxu0 0.0
    %1646 = vmatprep.subr.mxu0 0.0
    %1647 = vmatpush1.msra.mxu0 0.0
    %1648 = vmatprep.subr.mxu0 0.0
    %1649 = vmatpush1.msra.mxu0 0.0
    %1650 = vmatprep.subr.mxu0 0.0
    %1651 = vmatpush1.msra.mxu0 0.0
    %1652 = vmatprep.subr.mxu0 0.0
    %1653 = vmatpush1.msra.mxu0 0.0
    %1654 = vmatprep.subr.mxu0 0.0
    %1655 = vmatpush1.msra.mxu0 0.0
    %1656 = vmatprep.mubr.f32.mxu0 0.0
    %1657 = vmatmul.mubr.f32.gmra.mrb[0].mxu0 %v1590
    %v1658 = vpop.f32.mrb[0].mxu0
    %v1659 = vadd.f32 %v623, %v1658
    %v1660 = vpop.f32.mrb[0].mxu0
    %1661 = vdwg.mxu0
    %v1663 = vrot.slane %v1659, 1
    %v1664 = vrot.slane %v1659, 2
    %v1667 = vadd.f32 %v606, %v1663
    %v1668 = vadd.f32 %v611, %v1664
    %v1669 = vsub.f32 0.0, %v1667
    %v1670 = vsub.f32 0.0, %v1668
    %v1671 = vmul.f32 %v1669, 1.442695
    %v1672 = vpow.pop %v1671
    %v1673 = vmul.f32 %v1670, 1.442695
    %v1674 = vpow.pop %v1673
    %v1675 = vadd.f32 %v1672, 1.0
    %v1676 = vadd.f32 %v1674, 1.0
    %v1677 = vrcp.pop %v1675
    %v1678 = vmul.f32 1.0, %v1677
    %v1679 = vrcp.pop %v1676
    %v1680 = vmul.f32 1.0, %v1679
    %1681 = vrot.lane.b32.xlu0 %v1663, 96
    %v1682 = vpop.permute.xlu0 %1681
    %1683 = vrot.lane.b32.xlu0 %v1664, 96
    %v1684 = vpop.permute.xlu0 %1683
    %v1687 = vmul.f32 %v1678, %v1682
    %v1688 = vmul.f32 %v1680, %v1684
    %1691 = vrot.lane.b32.xlu0 %v1687, 32
    %v1692 = vpop.permute.xlu0 %1691
    %1693 = vrot.lane.b32.xlu0 %v1688, 32
    %v1694 = vpop.permute.xlu0 %1693
    %v1697 = vadd.f32 %v606, %v1692
    %v1698 = vadd.f32 %v611, %v1694
    %v1699 = vtanh.pop %v1697
    %v1700 = vtanh.pop %v1698
    %1701 = vset.pattern.permute.xlu0 7
    %1702 = vperm.xlu0 %1701, %v528
    %v1703 = vpop.permute.xlu0 %1702
    %v1707 = vrot.slane %v1699, 7
    %v1708 = vrot.slane %v1700, 6
    %v1709 = vsel %vm513, %v1708, %v1707
    %1710 = vrot.lane.b32.xlu0 %v1709, 96
    %v1711 = vpop.permute.xlu0 %1710
    %v1713 = vmul.f32 %v1703, %v1711
    %1714 = vset.pattern.permute.xlu0 7
    %1715 = vperm.xlu0 %1714, %v748
    %v1716 = vpop.permute.xlu0 %1715
    %v1718 = vmul.f32 %v1716, %v1581
    %v1719 = vadd.f32 %v1713, %v1718
    %vm1720 = vcmp.eq.s32.totalorder %v46, 8
    %v1721 = vsel %vm1720, 1, 0
    %1722 = vset.pattern.permute.xlu0 0
    %1723 = vperm.xlu0 %1722, %v1721
    %v1724 = vpop.permute.xlu0 %1723
    %vm1725 = vcmp.eq.s32.totalorder %v1724, 1
    %v1726 = vsel %vm1725, %v1719, %v1588
    %v1727 = vld [vmem:[%s10] sm:$0xff]
    %v1728 = vld [vmem:[%s10 + $0x8] sm:$0xff]
    %v1729 = vld [vmem:[%s10 + $0x10] sm:$0xff]
    %v1730 = vld [vmem:[%s10 + $0x18] sm:$0xff]
    %v1731 = vld [vmem:[%s10 + $0x20] sm:$0xff]
    %v1732 = vld [vmem:[%s10 + $0x28] sm:$0xff]
    %v1733 = vld [vmem:[%s10 + $0x30] sm:$0xff]
    %v1734 = vld [vmem:[%s10 + $0x38] sm:$0xff]
    %v1735 = vld [vmem:[%s10 + $0x40] sm:$0xff]
    %v1736 = vld [vmem:[%s10 + $0x48] sm:$0xff]
    %v1737 = vld [vmem:[%s10 + $0x50] sm:$0xff]
    %v1738 = vld [vmem:[%s10 + $0x58] sm:$0xff]
    %v1740 = vsel %vm141, %v1726, 0
    %1742 = vmatprep.subr.mxu0 0.0
    %1743 = vmatpush1.msra.mxu0 %v1731
    %1744 = vmatprep.subr.mxu0 0.0
    %1745 = vmatpush1.msra.mxu0 %v1732
    %1746 = vmatprep.subr.mxu0 0.0
    %1747 = vmatpush1.msra.mxu0 %v1733
    %1748 = vmatprep.subr.mxu0 0.0
    %1749 = vmatpush1.msra.mxu0 %v1734
    %1750 = vmatprep.subr.mxu0 0.0
    %1751 = vmatpush1.msra.mxu0 0.0
    %1752 = vmatprep.subr.mxu0 0.0
    %1753 = vmatpush1.msra.mxu0 0.0
    %1754 = vmatprep.subr.mxu0 0.0
    %1755 = vmatpush1.msra.mxu0 0.0
    %1756 = vmatprep.subr.mxu0 0.0
    %1757 = vmatpush1.msra.mxu0 0.0
    %1758 = vmatprep.subr.mxu0 0.0
    %1759 = vmatpush1.msra.mxu0 0.0
    %1760 = vmatprep.subr.mxu0 0.0
    %1761 = vmatpush1.msra.mxu0 0.0
    %1762 = vmatprep.subr.mxu0 0.0
    %1763 = vmatpush1.msra.mxu0 0.0
    %1764 = vmatprep.subr.mxu0 0.0
    %1765 = vmatpush1.msra.mxu0 0.0
    %1766 = vmatprep.subr.mxu0 0.0
    %1767 = vmatpush1.msra.mxu0 0.0
    %1768 = vmatprep.subr.mxu0 0.0
    %1769 = vmatpush1.msra.mxu0 0.0
    %1770 = vmatprep.subr.mxu0 0.0
    %1771 = vmatpush1.msra.mxu0 0.0
    %1772 = vmatprep.subr.mxu0 0.0
    %1773 = vmatpush1.msra.mxu0 0.0
    %1774 = vmatprep.subr.mxu0 0.0
    %1775 = vmatpush1.msra.mxu0 0.0
    %1776 = vmatprep.subr.mxu0 0.0
    %1777 = vmatpush1.msra.mxu0 0.0
    %1778 = vmatprep.subr.mxu0 0.0
    %1779 = vmatpush1.msra.mxu0 0.0
    %1780 = vmatprep.subr.mxu0 0.0
    %1781 = vmatpush1.msra.mxu0 0.0
    %1782 = vmatprep.subr.mxu0 0.0
    %1783 = vmatpush1.msra.mxu0 0.0
    %1784 = vmatprep.subr.mxu0 0.0
    %1785 = vmatpush1.msra.mxu0 0.0
    %1786 = vmatprep.subr.mxu0 0.0
    %1787 = vmatpush1.msra.mxu0 0.0
    %1788 = vmatprep.subr.mxu0 0.0
    %1789 = vmatpush1.msra.mxu0 0.0
    %1790 = vmatprep.subr.mxu0 0.0
    %1791 = vmatpush1.msra.mxu0 0.0
    %1792 = vmatprep.subr.mxu0 0.0
    %1793 = vmatpush1.msra.mxu0 0.0
    %1794 = vmatprep.subr.mxu0 0.0
    %1795 = vmatpush1.msra.mxu0 0.0
    %1796 = vmatprep.subr.mxu0 0.0
    %1797 = vmatpush1.msra.mxu0 0.0
    %1798 = vmatprep.subr.mxu0 0.0
    %1799 = vmatpush1.msra.mxu0 0.0
    %1800 = vmatprep.subr.mxu0 0.0
    %1801 = vmatpush1.msra.mxu0 0.0
    %1802 = vmatprep.subr.mxu0 0.0
    %1803 = vmatpush1.msra.mxu0 0.0
    %1804 = vmatprep.subr.mxu0 0.0
    %1805 = vmatpush1.msra.mxu0 0.0
    %1806 = vmatprep.mubr.f32.mxu0 0.0
    %1807 = vmatmul.mubr.f32.gmra.mrb[0].mxu0 %v1740
    %v1808 = vpop.f32.mrb[0].mxu0
    %v1809 = vadd.f32 0.0, %v1808
    %v1810 = vpop.f32.mrb[0].mxu0
    %1811 = vdwg.mxu0
    %1812 = vmatprep.subr.mxu0 0.0
    %1813 = vmatpush1.msra.mxu0 %v1727
    %1814 = vmatprep.subr.mxu0 0.0
    %1815 = vmatpush1.msra.mxu0 %v1728
    %1816 = vmatprep.subr.mxu0 0.0
    %1817 = vmatpush1.msra.mxu0 %v1729
    %1818 = vmatprep.subr.mxu0 0.0
    %1819 = vmatpush1.msra.mxu0 %v1730
    %1820 = vmatprep.subr.mxu0 0.0
    %1821 = vmatpush1.msra.mxu0 0.0
    %1822 = vmatprep.subr.mxu0 0.0
    %1823 = vmatpush1.msra.mxu0 0.0
    %1824 = vmatprep.subr.mxu0 0.0
    %1825 = vmatpush1.msra.mxu0 0.0
    %1826 = vmatprep.subr.mxu0 0.0
    %1827 = vmatpush1.msra.mxu0 0.0
    %1828 = vmatprep.subr.mxu0 0.0
    %1829 = vmatpush1.msra.mxu0 0.0
    %1830 = vmatprep.subr.mxu0 0.0
    %1831 = vmatpush1.msra.mxu0 0.0
    %1832 = vmatprep.subr.mxu0 0.0
    %1833 = vmatpush1.msra.mxu0 0.0
    %1834 = vmatprep.subr.mxu0 0.0
    %1835 = vmatpush1.msra.mxu0 0.0
    %1836 = vmatprep.subr.mxu0 0.0
    %1837 = vmatpush1.msra.mxu0 0.0
    %1838 = vmatprep.subr.mxu0 0.0
    %1839 = vmatpush1.msra.mxu0 0.0
    %1840 = vmatprep.subr.mxu0 0.0
    %1841 = vmatpush1.msra.mxu0 0.0
    %1842 = vmatprep.subr.mxu0 0.0
    %1843 = vmatpush1.msra.mxu0 0.0
    %1844 = vmatprep.subr.mxu0 0.0
    %1845 = vmatpush1.msra.mxu0 0.0
    %1846 = vmatprep.subr.mxu0 0.0
    %1847 = vmatpush1.msra.mxu0 0.0
    %1848 = vmatprep.subr.mxu0 0.0
    %1849 = vmatpush1.msra.mxu0 0.0
    %1850 = vmatprep.subr.mxu0 0.0
    %1851 = vmatpush1.msra.mxu0 0.0
    %1852 = vmatprep.subr.mxu0 0.0
    %1853 = vmatpush1.msra.mxu0 0.0
    %1854 = vmatprep.subr.mxu0 0.0
    %1855 = vmatpush1.msra.mxu0 0.0
    %1856 = vmatprep.subr.mxu0 0.0
    %1857 = vmatpush1.msra.mxu0 0.0
    %1858 = vmatprep.subr.mxu0 0.0
    %1859 = vmatpush1.msra.mxu0 0.0
    %1860 = vmatprep.subr.mxu0 0.0
    %1861 = vmatpush1.msra.mxu0 0.0
    %1862 = vmatprep.subr.mxu0 0.0
    %1863 = vmatpush1.msra.mxu0 0.0
    %1864 = vmatprep.subr.mxu0 0.0
    %1865 = vmatpush1.msra.mxu0 0.0
    %1866 = vmatprep.subr.mxu0 0.0
    %1867 = vmatpush1.msra.mxu0 0.0
    %1868 = vmatprep.subr.mxu0 0.0
    %1869 = vmatpush1.msra.mxu0 0.0
    %1870 = vmatprep.subr.mxu0 0.0
    %1871 = vmatpush1.msra.mxu0 0.0
    %1872 = vmatprep.subr.mxu0 0.0
    %1873 = vmatpush1.msra.mxu0 0.0
    %1874 = vmatprep.subr.mxu0 0.0
    %1875 = vmatpush1.msra.mxu0 0.0
    %1876 = vmatprep.mubr.f32.mxu0 0.0
    %1877 = vmatmul.mubr.f32.gmra.mrb[0].mxu0 %v625
    %v1878 = vpop.f32.mrb[0].mxu0
    %v1879 = vadd.f32 %v1809, %v1878
    %v1880 = vpop.f32.mrb[0].mxu0
    %1881 = vdwg.mxu0
    %v1882 = vsel %vm141, %v44, 0
    %1884 = vmatprep.subr.mxu0 0.0
    %1885 = vmatpush1.msra.mxu0 %v1735
    %1886 = vmatprep.subr.mxu0 0.0
    %1887 = vmatpush1.msra.mxu0 %v1736
    %1888 = vmatprep.subr.mxu0 0.0
    %1889 = vmatpush1.msra.mxu0 %v1737
    %1890 = vmatprep.subr.mxu0 0.0
    %1891 = vmatpush1.msra.mxu0 %v1738
    %1892 = vmatprep.subr.mxu0 0.0
    %1893 = vmatpush1.msra.mxu0 0.0
    %1894 = vmatprep.subr.mxu0 0.0
    %1895 = vmatpush1.msra.mxu0 0.0
    %1896 = vmatprep.subr.mxu0 0.0
    %1897 = vmatpush1.msra.mxu0 0.0
    %1898 = vmatprep.subr.mxu0 0.0
    %1899 = vmatpush1.msra.mxu0 0.0
    %1900 = vmatprep.subr.mxu0 0.0
    %1901 = vmatpush1.msra.mxu0 0.0
    %1902 = vmatprep.subr.mxu0 0.0
    %1903 = vmatpush1.msra.mxu0 0.0
    %1904 = vmatprep.subr.mxu0 0.0
    %1905 = vmatpush1.msra.mxu0 0.0
    %1906 = vmatprep.subr.mxu0 0.0
    %1907 = vmatpush1.msra.mxu0 0.0
    %1908 = vmatprep.subr.mxu0 0.0
    %1909 = vmatpush1.msra.mxu0 0.0
    %1910 = vmatprep.subr.mxu0 0.0
    %1911 = vmatpush1.msra.mxu0 0.0
    %1912 = vmatprep.subr.mxu0 0.0
    %1913 = vmatpush1.msra.mxu0 0.0
    %1914 = vmatprep.subr.mxu0 0.0
    %1915 = vmatpush1.msra.mxu0 0.0
    %1916 = vmatprep.subr.mxu0 0.0
    %1917 = vmatpush1.msra.mxu0 0.0
    %1918 = vmatprep.subr.mxu0 0.0
    %1919 = vmatpush1.msra.mxu0 0.0
    %1920 = vmatprep.subr.mxu0 0.0
    %1921 = vmatpush1.msra.mxu0 0.0
    %1922 = vmatprep.subr.mxu0 0.0
    %1923 = vmatpush1.msra.mxu0 0.0
    %1924 = vmatprep.subr.mxu0 0.0
    %1925 = vmatpush1.msra.mxu0 0.0
    %1926 = vmatprep.subr.mxu0 0.0
    %1927 = vmatpush1.msra.mxu0 0.0
    %1928 = vmatprep.subr.mxu0 0.0
    %1929 = vmatpush1.msra.mxu0 0.0
    %1930 = vmatprep.subr.mxu0 0.0
    %1931 = vmatpush1.msra.mxu0 0.0
    %1932 = vmatprep.subr.mxu0 0.0
    %1933 = vmatpush1.msra.mxu0 0.0
    %1934 = vmatprep.subr.mxu0 0.0
    %1935 = vmatpush1.msra.mxu0 0.0
    %1936 = vmatprep.subr.mxu0 0.0
    %1937 = vmatpush1.msra.mxu0 0.0
    %1938 = vmatprep.subr.mxu0 0.0
    %1939 = vmatpush1.msra.mxu0 0.0
    %1940 = vmatprep.subr.mxu0 0.0
    %1941 = vmatpush1.msra.mxu0 0.0
    %1942 = vmatprep.subr.mxu0 0.0
    %1943 = vmatpush1.msra.mxu0 0.0
    %1944 = vmatprep.subr.mxu0 0.0
    %1945 = vmatpush1.msra.mxu0 0.0
    %1946 = vmatprep.subr.mxu0 0.0
    %1947 = vmatpush1.msra.mxu0 0.0
    %1948 = vmatprep.mubr.f32.mxu0 0.0
    %1949 = vmatmul.mubr.f32.gmra.mrb[0].mxu0 %v1882
    %v1950 = vpop.f32.mrb[0].mxu0
    %v1951 = vadd.f32 0.0, %v1950
    %v1952 = vpop.f32.mrb[0].mxu0
    %1953 = vdwg.mxu0
    %v1954 = vadd.f32 %v1879, %v1951
    %v1955 = vld [vmem:[%s11] sm:$0x1]
    %v1957 = vlaneseq
    %v1958 = vshrl.u32 %v1957, 7
    %v1959 = vsub.s32 0, %v1958
    %v1960 = vrot.slane %v1955, %v1959
    %v1962 = vadd.f32 %v1954, %v1960
    %v1963 = vmax.f32 %v1962, 0.0
    %vm1964 = vcmask 254976
    %1965 = vst.msk [vmem:[#allocation2] sm:$0x3] %vm1964, %v1963
    // Predicated region
    $region50: #{tpu_custom_call.1} parent=1 // pred_check
      _
    $region51: #{tpu_custom_call.1} parent=1 // pred_check_branch
      %1967 = sbr.rel (0) target = $region53
    $region52: #{tpu_custom_call.1} parent=1 // pred_region
      %s1969 = ssub.s32 32, 32
      %1970 = vsyncadd [#allocation3], %s1969
      %s1972 = sshll.u32 [#allocation2], 4
      %s1973 = int_to_ptr.vmem [resolvable:$true] %s1972
      %1975 = dma.vmem_to_hbm [thread:$0]  %s1973, 32, %s12, [#allocation3]
    $region53: #{tpu_custom_call.1} parent=1 // pred_fallthru
      _
    // Predicated region
    $region54: #{tpu_custom_call.1} parent=1 // pred_check
      _
    $region55: #{tpu_custom_call.1} parent=1 // pred_check_branch
      %1977 = sbr.rel (0) target = $region57
    $region56: #{tpu_custom_call.1} parent=1 // pred_region
      %1978 = dma.done [#allocation3], 32
    $region57: #{tpu_custom_call.1} parent=1 // pred_fallthru
      _
    %1979 = vsyncpa [#allocation3], 1

</llo_original>
